<compile_context>
chip_gen: v6e
topology: v6e:2x2x1
jax: 0.10.0
libtpu: 0.0.40
codegen_flags: <defaults>
</compile_context>

<pallas_src>
import functools

import jax
import jax.numpy as jnp
from jax.experimental import pallas as pl
from jax.experimental.pallas import tpu as pltpu


def _round_up(n, m):
    return ((n + m - 1) // m) * m


# ---------------------------------------------------------------------------
# Single fused kernel: merged input projection + fwd recurrence + bwd single
# step + Linear head + log_softmax.  Gate column order per direction: [i,f,o,g]
# (permuted from PyTorch's [i,f,g,o] in the wrapper), each block H2p lanes.
# ---------------------------------------------------------------------------
def fused_bilstm_kernel(x_ref, w_all_ref, b_all_ref, whh_ref, wout_ref,
                        bout_ref, out_ref, *, seq_len, batch_pad, h2p):
    g4 = 4 * h2p

    x = x_ref[...]                                       # (T*Bp, Ep), time-major

    # ONE hoisted input projection for BOTH directions (merged weight):
    # (T*Bp, Ep) @ (Ep, 8*H2p) -> (T*Bp, 8*H2p).
    gx = (jnp.dot(x, w_all_ref[...], preferred_element_type=jnp.float32)
          + b_all_ref[...])

    whh = whh_ref[...]                                   # (H2p, 4*H2p)
    h = jnp.zeros((batch_pad, h2p), jnp.float32)
    c = jnp.zeros((batch_pad, h2p), jnp.float32)

    # Statically unrolled recurrence (T small & fixed).  Per step: one
    # (Bp,H2p)x(H2p,4*H2p) MXU dot + one contiguous sigmoid + two tanh.
    # TODO(synk): for T >~ 16-32 switch to lax.fori_loop over VMEM scratch h/c
    # and pin whh in the MXU weight regs via pltpu.matmul_push_rhs/acc_lhs/pop.
    for t in range(seq_len):
        gates = gx[t * batch_pad:(t + 1) * batch_pad, :g4] + jnp.dot(
            h, whh, preferred_element_type=jnp.float32)
        sig = jax.nn.sigmoid(gates[:, :3 * h2p])         # [i | f | o], one push
        g_g = jnp.tanh(gates[:, 3 * h2p:])
        i_g = sig[:, :h2p]
        f_g = sig[:, h2p:2 * h2p]
        o_g = sig[:, 2 * h2p:3 * h2p]
        c = f_g * c + i_g * g_g
        h = o_g * jnp.tanh(c)

    # Backward direction: lstm_out[:, -1, H2:] is the backward hidden after its
    # FIRST step (t = T-1, zero initial state).  Its input-projection gates are
    # the last time-step rows, columns [4*H2p : 8*H2p] of the merged gx -- no
    # extra matmul.  h0 = 0 kills the recurrent term; c0 = 0 kills the f gate.
    gb = gx[(seq_len - 1) * batch_pad:seq_len * batch_pad, g4:]
    sig_b = jax.nn.sigmoid(gb[:, :3 * h2p])
    g_b = jnp.tanh(gb[:, 3 * h2p:])
    i_b = sig_b[:, :h2p]
    o_b = sig_b[:, 2 * h2p:3 * h2p]
    h_b = o_b * jnp.tanh(i_b * g_b)

    # Classifier head + log_softmax.  H2p is a multiple of 128, so the concat
    # is lane-aligned (no XLU relayout).  Single (Bp, 2) store at the end.
    feat = jnp.concatenate([h, h_b], axis=-1)            # (Bp, 2*H2p)
    logits = (jnp.dot(feat, wout_ref[...],
                      preferred_element_type=jnp.float32) + bout_ref[...])
    z = logits - jnp.max(logits, axis=-1, keepdims=True)
    out_ref[...] = z - jnp.log(jnp.sum(jnp.exp(z), axis=-1, keepdims=True))


# ---------------------------------------------------------------------------
# Trace-time weight prep: permute PyTorch gate order [i,f,g,o] -> [i,f,o,g]
# and zero-pad each gate block to H2p lanes.
# ---------------------------------------------------------------------------
def _prep_gate_matrix(w, h2, h2p):
    """(4*H2, in) PyTorch rows [i,f,g,o] -> (in, 4*H2p) cols [i,f,o,g], 0-padded."""
    wt = w.T
    i, f, g, o = (wt[:, k * h2:(k + 1) * h2] for k in range(4))
    pad = lambda m: jnp.pad(m, ((0, 0), (0, h2p - h2)))
    return jnp.concatenate([pad(i), pad(f), pad(o), pad(g)], axis=1)


def _prep_gate_bias(b, h2, h2p):
    i, f, g, o = (b[k * h2:(k + 1) * h2] for k in range(4))
    pad = lambda v: jnp.pad(v, (0, h2p - h2))
    return jnp.concatenate([pad(i), pad(f), pad(o), pad(g)])


# ---------------------------------------------------------------------------
# Full forward, matching bi_lstm.forward.
# ---------------------------------------------------------------------------
@jax.jit
def bi_lstm_forward(inputs, params):
    # Embedding lookup kept as an XLA gather (data-dependent row gather);
    # everything downstream is one fused Pallas kernel.
    x = params["embedding"][inputs]                      # (B, T, E)
    B, T, E = x.shape
    H2 = params["w_hh_f"].shape[1]

    # Padded, (8,128)-tile-aligned layout.  All padding is zero-filled, which
    # keeps padded hidden lanes exactly 0 (i=f=o=0.5, g=0 => c=0 => h=0), so
    # results are unchanged.
    Bp = _round_up(B, 8)         # f32 sublane tile
    H2p = _round_up(H2, 128)     # lane tile
    Ep = _round_up(E, 128)

    # Time-major, padded activations.
    x_tm = jnp.transpose(x, (1, 0, 2)).astype(jnp.float32)          # (T, B, E)
    x_tm = jnp.pad(x_tm, ((0, 0), (0, Bp - B), (0, Ep - E)))        # (T, Bp, Ep)
    x_flat = x_tm.reshape(T * Bp, Ep)

    # Merged fwd+bwd input-projection weight, gate order [i,f,o,g] per dir.
    w_all = jnp.concatenate(
        [_prep_gate_matrix(params["w_ih_f"], H2, H2p),
         _prep_gate_matrix(params["w_ih_b"], H2, H2p)], axis=1)      # (E, 8*H2p)
    w_all = jnp.pad(w_all, ((0, Ep - E), (0, 0)))                    # (Ep, 8*H2p)
    b_all = jnp.concatenate(
        [_prep_gate_bias(params["b_ih_f"] + params["b_hh_f"], H2, H2p),
         _prep_gate_bias(params["b_ih_b"] + params["b_hh_b"], H2, H2p)])[None, :]

    # Recurrent weight (forward dir only; backward needs just one step from 0).
    whh = _prep_gate_matrix(params["w_hh_f"], H2, H2p)               # (H2, 4*H2p)
    whh = jnp.pad(whh, ((0, H2p - H2), (0, 0)))                      # (H2p, 4*H2p)

    # Head weight: pad rows per direction so the kernel-side concat lines up;
    # padded rows are zero.
    wo = params["w_out"].T                                           # (2*H2, 2)
    w_out = jnp.concatenate(
        [jnp.pad(wo[:H2], ((0, H2p - H2), (0, 0))),
         jnp.pad(wo[H2:], ((0, H2p - H2), (0, 0)))], axis=0)         # (2*H2p, 2)
    b_out = params["b_out"][None, :]                                 # (1, 2)

    kernel = functools.partial(fused_bilstm_kernel, seq_len=T,
                               batch_pad=Bp, h2p=H2p)
    vmem = pl.BlockSpec(memory_space=pltpu.MemorySpace.VMEM)
    out = pl.pallas_call(
        kernel,
        out_shape=jax.ShapeDtypeStruct((Bp, 2), jnp.float32),
        in_specs=[vmem] * 6,
        out_specs=vmem,
        # TODO(synk): when batch is non-trivial, add a batch-tile grid with
        # dimension_semantics=("parallel",) to light up v7x's 2nd TensorCore,
        # and cast operands to bf16 for 2x MXU rate (keep gate math f32).
    )(x_flat, w_all, b_all, whh, w_out, b_out)
    return out[:B]


# ---------------------------------------------------------------------------
# Pure-JAX reference (for correctness check only).
# ---------------------------------------------------------------------------
def lstm_step_ref(x_t, h, c, w_ih, w_hh, b_ih, b_hh):
    gates = x_t @ w_ih.T + b_ih + h @ w_hh.T + b_hh
    h2 = h.shape[-1]
    i = jax.nn.sigmoid(gates[:, :h2])
    f = jax.nn.sigmoid(gates[:, h2:2 * h2])
    g = jnp.tanh(gates[:, 2 * h2:3 * h2])
    o = jax.nn.sigmoid(gates[:, 3 * h2:])
    c = f * c + i * g
    h = o * jnp.tanh(c)
    return h, c


def reference_forward(inputs, params, H2):
    x = params["embedding"][inputs]                      # (B, T, E)
    B, T, _ = x.shape
    h = jnp.zeros((B, H2), jnp.float32)
    c = jnp.zeros((B, H2), jnp.float32)
    for t in range(T):
        h, c = lstm_step_ref(x[:, t], h, c, params["w_ih_f"], params["w_hh_f"],
                             params["b_ih_f"], params["b_hh_f"])
    hb = jnp.zeros((B, H2), jnp.float32)
    cb = jnp.zeros((B, H2), jnp.float32)
    hb, cb = lstm_step_ref(x[:, -1], hb, cb, params["w_ih_b"], params["w_hh_b"],
                           params["b_ih_b"], params["b_hh_b"])
    feat = jnp.concatenate([h, hb], axis=-1)
    logits = feat @ params["w_out"].T + params["b_out"]
    return jax.nn.log_softmax(logits, axis=1)


if __name__ == "__main__":
    vocab_size, embedding_dim, hidden_dim = 32, 16, 32
    batch_size, seq_len = 2, 8
    H2 = hidden_dim // 2

    key = jax.random.PRNGKey(0)
    ks = jax.random.split(key, 12)
    s = 1.0 / jnp.sqrt(jnp.float32(H2))
    sl = 1.0 / jnp.sqrt(jnp.float32(hidden_dim))
    u = lambda k, shape, sc: jax.random.uniform(k, shape, jnp.float32, -sc, sc)

    params = {
        "embedding": jax.random.normal(ks[0], (vocab_size, embedding_dim), jnp.float32),
        "w_ih_f": u(ks[1], (4 * H2, embedding_dim), s),
        "w_hh_f": u(ks[2], (4 * H2, H2), s),
        "b_ih_f": u(ks[3], (4 * H2,), s),
        "b_hh_f": u(ks[4], (4 * H2,), s),
        "w_ih_b": u(ks[5], (4 * H2, embedding_dim), s),
        "w_hh_b": u(ks[6], (4 * H2, H2), s),
        "b_ih_b": u(ks[7], (4 * H2,), s),
        "b_hh_b": u(ks[8], (4 * H2,), s),
        "w_out": u(ks[9], (2, hidden_dim), sl),
        "b_out": u(ks[10], (2,), sl),
    }
    inputs = jax.random.randint(ks[11], (batch_size, seq_len), 0, vocab_size)

    out = bi_lstm_forward(inputs, params)
    out = jax.block_until_ready(out)

    ref = reference_forward(inputs, params, H2)
    assert out.shape == (batch_size, 2)
    assert jnp.allclose(out, ref, atol=1e-4, rtol=1e-4)
    print("KERNEL_OK")
</pallas_src>

<mosaic_0001>
module attributes {stable_mosaic.version = 11 : i64} {
  func.func @fused_bilstm_kernel(%arg0: memref<64x128xf32, #tpu.memory_space<vmem>>, %arg1: memref<128x1024xf32, #tpu.memory_space<vmem>>, %arg2: memref<1x1024xf32, #tpu.memory_space<vmem>>, %arg3: memref<128x512xf32, #tpu.memory_space<vmem>>, %arg4: memref<256x2xf32, #tpu.memory_space<vmem>>, %arg5: memref<1x2xf32, #tpu.memory_space<vmem>>, %arg6: memref<8x2xf32, #tpu.memory_space<vmem>>) attributes {dimension_semantics = [], scalar_prefetch = 0 : i64, scratch_operands = 0 : i64, tpu.core_type = #tpu.core_type<tc>} {
    %c0 = arith.constant 0 : index
    %c0_0 = arith.constant 0 : index
    %0 = vector.load %arg0[%c0, %c0_0] : memref<64x128xf32, #tpu.memory_space<vmem>>, vector<64x128xf32>
    %c0_1 = arith.constant 0 : index
    %c0_2 = arith.constant 0 : index
    %1 = vector.load %arg1[%c0_1, %c0_2] : memref<128x1024xf32, #tpu.memory_space<vmem>>, vector<128x1024xf32>
    %cst = arith.constant dense<0.000000e+00> : vector<64x1024xf32>
    %2 = tpu.matmul %0, %1, %cst {dimension_numbers = #tpu.dot_dimension_numbers<[1], [0], [0], [1], [0, 0, 1, 1], [], []>} : vector<64x128xf32>, vector<128x1024xf32>, vector<64x1024xf32> -> vector<64x1024xf32>
    %c0_3 = arith.constant 0 : index
    %c0_4 = arith.constant 0 : index
    %3 = vector.load %arg2[%c0_3, %c0_4] : memref<1x1024xf32, #tpu.memory_space<vmem>>, vector<1x1024xf32>
    %4 = vector.broadcast %3 : vector<1x1024xf32> to vector<64x1024xf32>
    %5 = arith.addf %2, %4 : vector<64x1024xf32>
    %c0_5 = arith.constant 0 : index
    %c0_6 = arith.constant 0 : index
    %6 = vector.load %arg3[%c0_5, %c0_6] : memref<128x512xf32, #tpu.memory_space<vmem>>, vector<128x512xf32>
    %cst_7 = arith.constant 0.000000e+00 : f32
    %7 = vector.broadcast %cst_7 : f32 to vector<8x128xf32>
    %cst_8 = arith.constant 0.000000e+00 : f32
    %8 = vector.broadcast %cst_8 : f32 to vector<8x128xf32>
    %9 = vector.extract_strided_slice %5 {offsets = [0, 0], sizes = [8, 512], strides = [1, 1]} : vector<64x1024xf32> to vector<8x512xf32>
    %cst_9 = arith.constant dense<0.000000e+00> : vector<8x512xf32>
    %10 = tpu.matmul %7, %6, %cst_9 {dimension_numbers = #tpu.dot_dimension_numbers<[1], [0], [0], [1], [0, 0, 1, 1], [], []>} : vector<8x128xf32>, vector<128x512xf32>, vector<8x512xf32> -> vector<8x512xf32>
    %11 = arith.addf %9, %10 : vector<8x512xf32>
    %12 = vector.extract_strided_slice %11 {offsets = [0, 0], sizes = [8, 384], strides = [1, 1]} : vector<8x512xf32> to vector<8x384xf32>
    %13 = arith.negf %12 : vector<8x384xf32>
    %14 = math.exp %13 : vector<8x384xf32>
    %cst_10 = arith.constant 1.000000e+00 : f32
    %15 = vector.broadcast %cst_10 : f32 to vector<8x384xf32>
    %16 = arith.addf %15, %14 : vector<8x384xf32>
    %17 = arith.divf %15, %16 : vector<8x384xf32>
    %18 = vector.extract_strided_slice %11 {offsets = [0, 384], sizes = [8, 128], strides = [1, 1]} : vector<8x512xf32> to vector<8x128xf32>
    %19 = math.tanh %18 : vector<8x128xf32>
    %20 = vector.extract_strided_slice %17 {offsets = [0, 0], sizes = [8, 128], strides = [1, 1]} : vector<8x384xf32> to vector<8x128xf32>
    %21 = vector.extract_strided_slice %17 {offsets = [0, 128], sizes = [8, 128], strides = [1, 1]} : vector<8x384xf32> to vector<8x128xf32>
    %22 = vector.extract_strided_slice %17 {offsets = [0, 256], sizes = [8, 128], strides = [1, 1]} : vector<8x384xf32> to vector<8x128xf32>
    %23 = arith.mulf %21, %8 : vector<8x128xf32>
    %24 = arith.mulf %20, %19 : vector<8x128xf32>
    %25 = arith.addf %23, %24 : vector<8x128xf32>
    %26 = math.tanh %25 : vector<8x128xf32>
    %27 = arith.mulf %22, %26 : vector<8x128xf32>
    %28 = vector.extract_strided_slice %5 {offsets = [8, 0], sizes = [8, 512], strides = [1, 1]} : vector<64x1024xf32> to vector<8x512xf32>
    %cst_11 = arith.constant dense<0.000000e+00> : vector<8x512xf32>
    %29 = tpu.matmul %27, %6, %cst_11 {dimension_numbers = #tpu.dot_dimension_numbers<[1], [0], [0], [1], [0, 0, 1, 1], [], []>} : vector<8x128xf32>, vector<128x512xf32>, vector<8x512xf32> -> vector<8x512xf32>
    %30 = arith.addf %28, %29 : vector<8x512xf32>
    %31 = vector.extract_strided_slice %30 {offsets = [0, 0], sizes = [8, 384], strides = [1, 1]} : vector<8x512xf32> to vector<8x384xf32>
    %32 = arith.negf %31 : vector<8x384xf32>
    %33 = math.exp %32 : vector<8x384xf32>
    %cst_12 = arith.constant 1.000000e+00 : f32
    %34 = vector.broadcast %cst_12 : f32 to vector<8x384xf32>
    %35 = arith.addf %34, %33 : vector<8x384xf32>
    %36 = arith.divf %34, %35 : vector<8x384xf32>
    %37 = vector.extract_strided_slice %30 {offsets = [0, 384], sizes = [8, 128], strides = [1, 1]} : vector<8x512xf32> to vector<8x128xf32>
    %38 = math.tanh %37 : vector<8x128xf32>
    %39 = vector.extract_strided_slice %36 {offsets = [0, 0], sizes = [8, 128], strides = [1, 1]} : vector<8x384xf32> to vector<8x128xf32>
    %40 = vector.extract_strided_slice %36 {offsets = [0, 128], sizes = [8, 128], strides = [1, 1]} : vector<8x384xf32> to vector<8x128xf32>
    %41 = vector.extract_strided_slice %36 {offsets = [0, 256], sizes = [8, 128], strides = [1, 1]} : vector<8x384xf32> to vector<8x128xf32>
    %42 = arith.mulf %40, %25 : vector<8x128xf32>
    %43 = arith.mulf %39, %38 : vector<8x128xf32>
    %44 = arith.addf %42, %43 : vector<8x128xf32>
    %45 = math.tanh %44 : vector<8x128xf32>
    %46 = arith.mulf %41, %45 : vector<8x128xf32>
    %47 = vector.extract_strided_slice %5 {offsets = [16, 0], sizes = [8, 512], strides = [1, 1]} : vector<64x1024xf32> to vector<8x512xf32>
    %cst_13 = arith.constant dense<0.000000e+00> : vector<8x512xf32>
    %48 = tpu.matmul %46, %6, %cst_13 {dimension_numbers = #tpu.dot_dimension_numbers<[1], [0], [0], [1], [0, 0, 1, 1], [], []>} : vector<8x128xf32>, vector<128x512xf32>, vector<8x512xf32> -> vector<8x512xf32>
    %49 = arith.addf %47, %48 : vector<8x512xf32>
    %50 = vector.extract_strided_slice %49 {offsets = [0, 0], sizes = [8, 384], strides = [1, 1]} : vector<8x512xf32> to vector<8x384xf32>
    %51 = arith.negf %50 : vector<8x384xf32>
    %52 = math.exp %51 : vector<8x384xf32>
    %cst_14 = arith.constant 1.000000e+00 : f32
    %53 = vector.broadcast %cst_14 : f32 to vector<8x384xf32>
    %54 = arith.addf %53, %52 : vector<8x384xf32>
    %55 = arith.divf %53, %54 : vector<8x384xf32>
    %56 = vector.extract_strided_slice %49 {offsets = [0, 384], sizes = [8, 128], strides = [1, 1]} : vector<8x512xf32> to vector<8x128xf32>
    %57 = math.tanh %56 : vector<8x128xf32>
    %58 = vector.extract_strided_slice %55 {offsets = [0, 0], sizes = [8, 128], strides = [1, 1]} : vector<8x384xf32> to vector<8x128xf32>
    %59 = vector.extract_strided_slice %55 {offsets = [0, 128], sizes = [8, 128], strides = [1, 1]} : vector<8x384xf32> to vector<8x128xf32>
    %60 = vector.extract_strided_slice %55 {offsets = [0, 256], sizes = [8, 128], strides = [1, 1]} : vector<8x384xf32> to vector<8x128xf32>
    %61 = arith.mulf %59, %44 : vector<8x128xf32>
    %62 = arith.mulf %58, %57 : vector<8x128xf32>
    %63 = arith.addf %61, %62 : vector<8x128xf32>
    %64 = math.tanh %63 : vector<8x128xf32>
    %65 = arith.mulf %60, %64 : vector<8x128xf32>
    %66 = vector.extract_strided_slice %5 {offsets = [24, 0], sizes = [8, 512], strides = [1, 1]} : vector<64x1024xf32> to vector<8x512xf32>
    %cst_15 = arith.constant dense<0.000000e+00> : vector<8x512xf32>
    %67 = tpu.matmul %65, %6, %cst_15 {dimension_numbers = #tpu.dot_dimension_numbers<[1], [0], [0], [1], [0, 0, 1, 1], [], []>} : vector<8x128xf32>, vector<128x512xf32>, vector<8x512xf32> -> vector<8x512xf32>
    %68 = arith.addf %66, %67 : vector<8x512xf32>
    %69 = vector.extract_strided_slice %68 {offsets = [0, 0], sizes = [8, 384], strides = [1, 1]} : vector<8x512xf32> to vector<8x384xf32>
    %70 = arith.negf %69 : vector<8x384xf32>
    %71 = math.exp %70 : vector<8x384xf32>
    %cst_16 = arith.constant 1.000000e+00 : f32
    %72 = vector.broadcast %cst_16 : f32 to vector<8x384xf32>
    %73 = arith.addf %72, %71 : vector<8x384xf32>
    %74 = arith.divf %72, %73 : vector<8x384xf32>
    %75 = vector.extract_strided_slice %68 {offsets = [0, 384], sizes = [8, 128], strides = [1, 1]} : vector<8x512xf32> to vector<8x128xf32>
    %76 = math.tanh %75 : vector<8x128xf32>
    %77 = vector.extract_strided_slice %74 {offsets = [0, 0], sizes = [8, 128], strides = [1, 1]} : vector<8x384xf32> to vector<8x128xf32>
    %78 = vector.extract_strided_slice %74 {offsets = [0, 128], sizes = [8, 128], strides = [1, 1]} : vector<8x384xf32> to vector<8x128xf32>
    %79 = vector.extract_strided_slice %74 {offsets = [0, 256], sizes = [8, 128], strides = [1, 1]} : vector<8x384xf32> to vector<8x128xf32>
    %80 = arith.mulf %78, %63 : vector<8x128xf32>
    %81 = arith.mulf %77, %76 : vector<8x128xf32>
    %82 = arith.addf %80, %81 : vector<8x128xf32>
    %83 = math.tanh %82 : vector<8x128xf32>
    %84 = arith.mulf %79, %83 : vector<8x128xf32>
    %85 = vector.extract_strided_slice %5 {offsets = [32, 0], sizes = [8, 512], strides = [1, 1]} : vector<64x1024xf32> to vector<8x512xf32>
    %cst_17 = arith.constant dense<0.000000e+00> : vector<8x512xf32>
    %86 = tpu.matmul %84, %6, %cst_17 {dimension_numbers = #tpu.dot_dimension_numbers<[1], [0], [0], [1], [0, 0, 1, 1], [], []>} : vector<8x128xf32>, vector<128x512xf32>, vector<8x512xf32> -> vector<8x512xf32>
    %87 = arith.addf %85, %86 : vector<8x512xf32>
    %88 = vector.extract_strided_slice %87 {offsets = [0, 0], sizes = [8, 384], strides = [1, 1]} : vector<8x512xf32> to vector<8x384xf32>
    %89 = arith.negf %88 : vector<8x384xf32>
    %90 = math.exp %89 : vector<8x384xf32>
    %cst_18 = arith.constant 1.000000e+00 : f32
    %91 = vector.broadcast %cst_18 : f32 to vector<8x384xf32>
    %92 = arith.addf %91, %90 : vector<8x384xf32>
    %93 = arith.divf %91, %92 : vector<8x384xf32>
    %94 = vector.extract_strided_slice %87 {offsets = [0, 384], sizes = [8, 128], strides = [1, 1]} : vector<8x512xf32> to vector<8x128xf32>
    %95 = math.tanh %94 : vector<8x128xf32>
    %96 = vector.extract_strided_slice %93 {offsets = [0, 0], sizes = [8, 128], strides = [1, 1]} : vector<8x384xf32> to vector<8x128xf32>
    %97 = vector.extract_strided_slice %93 {offsets = [0, 128], sizes = [8, 128], strides = [1, 1]} : vector<8x384xf32> to vector<8x128xf32>
    %98 = vector.extract_strided_slice %93 {offsets = [0, 256], sizes = [8, 128], strides = [1, 1]} : vector<8x384xf32> to vector<8x128xf32>
    %99 = arith.mulf %97, %82 : vector<8x128xf32>
    %100 = arith.mulf %96, %95 : vector<8x128xf32>
    %101 = arith.addf %99, %100 : vector<8x128xf32>
    %102 = math.tanh %101 : vector<8x128xf32>
    %103 = arith.mulf %98, %102 : vector<8x128xf32>
    %104 = vector.extract_strided_slice %5 {offsets = [40, 0], sizes = [8, 512], strides = [1, 1]} : vector<64x1024xf32> to vector<8x512xf32>
    %cst_19 = arith.constant dense<0.000000e+00> : vector<8x512xf32>
    %105 = tpu.matmul %103, %6, %cst_19 {dimension_numbers = #tpu.dot_dimension_numbers<[1], [0], [0], [1], [0, 0, 1, 1], [], []>} : vector<8x128xf32>, vector<128x512xf32>, vector<8x512xf32> -> vector<8x512xf32>
    %106 = arith.addf %104, %105 : vector<8x512xf32>
    %107 = vector.extract_strided_slice %106 {offsets = [0, 0], sizes = [8, 384], strides = [1, 1]} : vector<8x512xf32> to vector<8x384xf32>
    %108 = arith.negf %107 : vector<8x384xf32>
    %109 = math.exp %108 : vector<8x384xf32>
    %cst_20 = arith.constant 1.000000e+00 : f32
    %110 = vector.broadcast %cst_20 : f32 to vector<8x384xf32>
    %111 = arith.addf %110, %109 : vector<8x384xf32>
    %112 = arith.divf %110, %111 : vector<8x384xf32>
    %113 = vector.extract_strided_slice %106 {offsets = [0, 384], sizes = [8, 128], strides = [1, 1]} : vector<8x512xf32> to vector<8x128xf32>
    %114 = math.tanh %113 : vector<8x128xf32>
    %115 = vector.extract_strided_slice %112 {offsets = [0, 0], sizes = [8, 128], strides = [1, 1]} : vector<8x384xf32> to vector<8x128xf32>
    %116 = vector.extract_strided_slice %112 {offsets = [0, 128], sizes = [8, 128], strides = [1, 1]} : vector<8x384xf32> to vector<8x128xf32>
    %117 = vector.extract_strided_slice %112 {offsets = [0, 256], sizes = [8, 128], strides = [1, 1]} : vector<8x384xf32> to vector<8x128xf32>
    %118 = arith.mulf %116, %101 : vector<8x128xf32>
    %119 = arith.mulf %115, %114 : vector<8x128xf32>
    %120 = arith.addf %118, %119 : vector<8x128xf32>
    %121 = math.tanh %120 : vector<8x128xf32>
    %122 = arith.mulf %117, %121 : vector<8x128xf32>
    %123 = vector.extract_strided_slice %5 {offsets = [48, 0], sizes = [8, 512], strides = [1, 1]} : vector<64x1024xf32> to vector<8x512xf32>
    %cst_21 = arith.constant dense<0.000000e+00> : vector<8x512xf32>
    %124 = tpu.matmul %122, %6, %cst_21 {dimension_numbers = #tpu.dot_dimension_numbers<[1], [0], [0], [1], [0, 0, 1, 1], [], []>} : vector<8x128xf32>, vector<128x512xf32>, vector<8x512xf32> -> vector<8x512xf32>
    %125 = arith.addf %123, %124 : vector<8x512xf32>
    %126 = vector.extract_strided_slice %125 {offsets = [0, 0], sizes = [8, 384], strides = [1, 1]} : vector<8x512xf32> to vector<8x384xf32>
    %127 = arith.negf %126 : vector<8x384xf32>
    %128 = math.exp %127 : vector<8x384xf32>
    %cst_22 = arith.constant 1.000000e+00 : f32
    %129 = vector.broadcast %cst_22 : f32 to vector<8x384xf32>
    %130 = arith.addf %129, %128 : vector<8x384xf32>
    %131 = arith.divf %129, %130 : vector<8x384xf32>
    %132 = vector.extract_strided_slice %125 {offsets = [0, 384], sizes = [8, 128], strides = [1, 1]} : vector<8x512xf32> to vector<8x128xf32>
    %133 = math.tanh %132 : vector<8x128xf32>
    %134 = vector.extract_strided_slice %131 {offsets = [0, 0], sizes = [8, 128], strides = [1, 1]} : vector<8x384xf32> to vector<8x128xf32>
    %135 = vector.extract_strided_slice %131 {offsets = [0, 128], sizes = [8, 128], strides = [1, 1]} : vector<8x384xf32> to vector<8x128xf32>
    %136 = vector.extract_strided_slice %131 {offsets = [0, 256], sizes = [8, 128], strides = [1, 1]} : vector<8x384xf32> to vector<8x128xf32>
    %137 = arith.mulf %135, %120 : vector<8x128xf32>
    %138 = arith.mulf %134, %133 : vector<8x128xf32>
    %139 = arith.addf %137, %138 : vector<8x128xf32>
    %140 = math.tanh %139 : vector<8x128xf32>
    %141 = arith.mulf %136, %140 : vector<8x128xf32>
    %142 = vector.extract_strided_slice %5 {offsets = [56, 0], sizes = [8, 512], strides = [1, 1]} : vector<64x1024xf32> to vector<8x512xf32>
    %cst_23 = arith.constant dense<0.000000e+00> : vector<8x512xf32>
    %143 = tpu.matmul %141, %6, %cst_23 {dimension_numbers = #tpu.dot_dimension_numbers<[1], [0], [0], [1], [0, 0, 1, 1], [], []>} : vector<8x128xf32>, vector<128x512xf32>, vector<8x512xf32> -> vector<8x512xf32>
    %144 = arith.addf %142, %143 : vector<8x512xf32>
    %145 = vector.extract_strided_slice %144 {offsets = [0, 0], sizes = [8, 384], strides = [1, 1]} : vector<8x512xf32> to vector<8x384xf32>
    %146 = arith.negf %145 : vector<8x384xf32>
    %147 = math.exp %146 : vector<8x384xf32>
    %cst_24 = arith.constant 1.000000e+00 : f32
    %148 = vector.broadcast %cst_24 : f32 to vector<8x384xf32>
    %149 = arith.addf %148, %147 : vector<8x384xf32>
    %150 = arith.divf %148, %149 : vector<8x384xf32>
    %151 = vector.extract_strided_slice %144 {offsets = [0, 384], sizes = [8, 128], strides = [1, 1]} : vector<8x512xf32> to vector<8x128xf32>
    %152 = math.tanh %151 : vector<8x128xf32>
    %153 = vector.extract_strided_slice %150 {offsets = [0, 0], sizes = [8, 128], strides = [1, 1]} : vector<8x384xf32> to vector<8x128xf32>
    %154 = vector.extract_strided_slice %150 {offsets = [0, 128], sizes = [8, 128], strides = [1, 1]} : vector<8x384xf32> to vector<8x128xf32>
    %155 = vector.extract_strided_slice %150 {offsets = [0, 256], sizes = [8, 128], strides = [1, 1]} : vector<8x384xf32> to vector<8x128xf32>
    %156 = arith.mulf %154, %139 : vector<8x128xf32>
    %157 = arith.mulf %153, %152 : vector<8x128xf32>
    %158 = arith.addf %156, %157 : vector<8x128xf32>
    %159 = math.tanh %158 : vector<8x128xf32>
    %160 = arith.mulf %155, %159 : vector<8x128xf32>
    %161 = vector.extract_strided_slice %5 {offsets = [56, 512], sizes = [8, 512], strides = [1, 1]} : vector<64x1024xf32> to vector<8x512xf32>
    %162 = vector.extract_strided_slice %161 {offsets = [0, 0], sizes = [8, 384], strides = [1, 1]} : vector<8x512xf32> to vector<8x384xf32>
    %163 = arith.negf %162 : vector<8x384xf32>
    %164 = math.exp %163 : vector<8x384xf32>
    %cst_25 = arith.constant 1.000000e+00 : f32
    %165 = vector.broadcast %cst_25 : f32 to vector<8x384xf32>
    %166 = arith.addf %165, %164 : vector<8x384xf32>
    %167 = arith.divf %165, %166 : vector<8x384xf32>
    %168 = vector.extract_strided_slice %161 {offsets = [0, 384], sizes = [8, 128], strides = [1, 1]} : vector<8x512xf32> to vector<8x128xf32>
    %169 = math.tanh %168 : vector<8x128xf32>
    %170 = vector.extract_strided_slice %167 {offsets = [0, 0], sizes = [8, 128], strides = [1, 1]} : vector<8x384xf32> to vector<8x128xf32>
    %171 = vector.extract_strided_slice %167 {offsets = [0, 256], sizes = [8, 128], strides = [1, 1]} : vector<8x384xf32> to vector<8x128xf32>
    %172 = arith.mulf %170, %169 : vector<8x128xf32>
    %173 = math.tanh %172 : vector<8x128xf32>
    %174 = arith.mulf %171, %173 : vector<8x128xf32>
    %175 = tpu.concatenate %160, %174 in 1 : vector<8x128xf32>, vector<8x128xf32> -> vector<8x256xf32>
    %c0_26 = arith.constant 0 : index
    %c0_27 = arith.constant 0 : index
    %176 = vector.load %arg4[%c0_26, %c0_27] : memref<256x2xf32, #tpu.memory_space<vmem>>, vector<256x2xf32>
    %cst_28 = arith.constant dense<0.000000e+00> : vector<8x2xf32>
    %177 = tpu.matmul %175, %176, %cst_28 {dimension_numbers = #tpu.dot_dimension_numbers<[1], [0], [0], [1], [0, 0, 1, 1], [], []>} : vector<8x256xf32>, vector<256x2xf32>, vector<8x2xf32> -> vector<8x2xf32>
    %c0_29 = arith.constant 0 : index
    %c0_30 = arith.constant 0 : index
    %178 = vector.load %arg5[%c0_29, %c0_30] : memref<1x2xf32, #tpu.memory_space<vmem>>, vector<1x2xf32>
    %179 = vector.broadcast %178 : vector<1x2xf32> to vector<8x2xf32>
    %180 = arith.addf %177, %179 : vector<8x2xf32>
    %cst_31 = arith.constant dense<0xFF800000> : vector<8xf32>
    %181 = vector.multi_reduction <maximumf>, %180, %cst_31 [1] : vector<8x2xf32> to vector<8xf32>
    %182 = vector.shape_cast %181 : vector<8xf32> to vector<8x1xf32>
    %183 = vector.broadcast %182 : vector<8x1xf32> to vector<8x2xf32>
    %184 = arith.subf %180, %183 : vector<8x2xf32>
    %185 = math.exp %184 : vector<8x2xf32>
    %cst_32 = arith.constant dense<0.000000e+00> : vector<8xf32>
    %186 = vector.multi_reduction <add>, %185, %cst_32 [1] : vector<8x2xf32> to vector<8xf32>
    %187 = vector.shape_cast %186 : vector<8xf32> to vector<8x1xf32>
    %188 = math.log %187 : vector<8x1xf32>
    %189 = vector.broadcast %188 : vector<8x1xf32> to vector<8x2xf32>
    %190 = arith.subf %184, %189 : vector<8x2xf32>
    %c0_33 = arith.constant 0 : index
    %c0_34 = arith.constant 0 : index
    %191 = vector.load %arg6[%c0_33, %c0_34] : memref<8x2xf32, #tpu.memory_space<vmem>>, vector<8x2xf32>
    tpu.vector_store %arg6[%c0_33, %c0_34], %190 {strides = array<i32>} : memref<8x2xf32, #tpu.memory_space<vmem>>, vector<8x2xf32>,
    return
  }
}

</mosaic_0001>

<llo_original>
// kernel: custom-call
$region0: #{custom-call}
  %s0 = inlined_call_operand.vmem [shape: f32[1024], index: 0, kind: output, shape index: {}]

// kernel: bi_lstm_forward.1
$region0: #{bi_lstm_forward.1}
  #allocation0 [shape = 'u32[]', space=smem, size = 0x4, offset = 0x4, fixed_abs, tag = 'smem constant byte address 0x4 - core index']
  #allocation1 [shape = 'u32[144,128]{1,0:T(1,128)}', space=vmem, size = 0x12000, scoped, tag = 'internal scratch']
  %s0 = inlined_call_operand.vmem [shape: f32[64,128], index: 0, kind: input, shape index: {}]
  %s1 = inlined_call_operand.vmem [shape: f32[128,1024], index: 1, kind: input, shape index: {}]
  %s2 = inlined_call_operand.vmem [shape: f32[1,1024], index: 2, kind: input, shape index: {}]
  %s3 = inlined_call_operand.vmem [shape: f32[128,512], index: 3, kind: input, shape index: {}]
  %s4 = inlined_call_operand.vmem [shape: f32[256,2], index: 4, kind: input, shape index: {}]
  %s5 = inlined_call_operand.vmem [shape: f32[1,2], index: 5, kind: input, shape index: {}]
  %s6 = inlined_call_operand.vmem [shape: f32[8,2], index: 6, kind: output, shape index: {}]
  %s7 = sld [smem:[#allocation0]]
  $region34: #{bi_lstm_forward.1} parent=0
    _
  %s9 = ssub.s32 1, %s7
  %s10 = scalar_select 0, %s9, %s7
  // Predicated region
  $region2: #{bi_lstm_forward.1} parent=0 // pred_check
    _
  $region3: #{bi_lstm_forward.1} parent=0 // pred_check_branch
    %12 = sbr.rel (0) target = $region5
  $region4: #{bi_lstm_forward.1} parent=0 // pred_region
    _
  $region5: #{bi_lstm_forward.1} parent=0 // pred_fallthru
    _
  // Predicated region
  $region6: #{bi_lstm_forward.1} parent=0 // pred_check
    _
  $region7: #{bi_lstm_forward.1} parent=0 // pred_check_branch
    %14 = sbr.rel (0) target = $region9
  $region8: #{bi_lstm_forward.1} parent=0 // pred_region
    _
  $region9: #{bi_lstm_forward.1} parent=0 // pred_fallthru
    _
  // Predicated region
  $region10: #{bi_lstm_forward.1} parent=0 // pred_check
    _
  $region11: #{bi_lstm_forward.1} parent=0 // pred_check_branch
    %16 = sbr.rel (0) target = $region13
  $region12: #{bi_lstm_forward.1} parent=0 // pred_region
    _
  $region13: #{bi_lstm_forward.1} parent=0 // pred_fallthru
    _
  // Predicated region
  $region14: #{bi_lstm_forward.1} parent=0 // pred_check
    _
  $region15: #{bi_lstm_forward.1} parent=0 // pred_check_branch
    %18 = sbr.rel (0) target = $region17
  $region16: #{bi_lstm_forward.1} parent=0 // pred_region
    _
  $region17: #{bi_lstm_forward.1} parent=0 // pred_fallthru
    _
  // Predicated region
  $region18: #{bi_lstm_forward.1} parent=0 // pred_check
    _
  $region19: #{bi_lstm_forward.1} parent=0 // pred_check_branch
    %20 = sbr.rel (0) target = $region21
  $region20: #{bi_lstm_forward.1} parent=0 // pred_region
    _
  $region21: #{bi_lstm_forward.1} parent=0 // pred_fallthru
    _
  // Predicated region
  $region22: #{bi_lstm_forward.1} parent=0 // pred_check
    _
  $region23: #{bi_lstm_forward.1} parent=0 // pred_check_branch
    %22 = sbr.rel (0) target = $region25
  $region24: #{bi_lstm_forward.1} parent=0 // pred_region
    _
  $region25: #{bi_lstm_forward.1} parent=0 // pred_fallthru
    _
  %v23 = vld [vmem:[%s0] sm:$0xff]
  %v24 = vld [vmem:[%s0 + $0x8] sm:$0xff]
  %v25 = vld [vmem:[%s0 + $0x10] sm:$0xff]
  %v26 = vld [vmem:[%s0 + $0x18] sm:$0xff]
  %v27 = vld [vmem:[%s0 + $0x20] sm:$0xff]
  %v28 = vld [vmem:[%s0 + $0x28] sm:$0xff]
  %v29 = vld [vmem:[%s0 + $0x30] sm:$0xff]
  %v30 = vld [vmem:[%s0 + $0x38] sm:$0xff]
  %v31 = vld [vmem:[%s1] sm:$0xff]
  %v32 = vld [vmem:[%s1 + $0x8] sm:$0xff]
  %v33 = vld [vmem:[%s1 + $0x10] sm:$0xff]
  %v34 = vld [vmem:[%s1 + $0x18] sm:$0xff]
  %v35 = vld [vmem:[%s1 + $0x20] sm:$0xff]
  %v36 = vld [vmem:[%s1 + $0x28] sm:$0xff]
  %v37 = vld [vmem:[%s1 + $0x30] sm:$0xff]
  %v38 = vld [vmem:[%s1 + $0x38] sm:$0xff]
  %v39 = vld [vmem:[%s1 + $0x40] sm:$0xff]
  %v40 = vld [vmem:[%s1 + $0x48] sm:$0xff]
  %v41 = vld [vmem:[%s1 + $0x50] sm:$0xff]
  %v42 = vld [vmem:[%s1 + $0x58] sm:$0xff]
  %v43 = vld [vmem:[%s1 + $0x60] sm:$0xff]
  %v44 = vld [vmem:[%s1 + $0x68] sm:$0xff]
  %v45 = vld [vmem:[%s1 + $0x70] sm:$0xff]
  %v46 = vld [vmem:[%s1 + $0x78] sm:$0xff]
  %v47 = vld [vmem:[%s1 + $0x80] sm:$0xff]
  %v48 = vld [vmem:[%s1 + $0x88] sm:$0xff]
  %v49 = vld [vmem:[%s1 + $0x90] sm:$0xff]
  %v50 = vld [vmem:[%s1 + $0x98] sm:$0xff]
  %v51 = vld [vmem:[%s1 + $0xa0] sm:$0xff]
  %v52 = vld [vmem:[%s1 + $0xa8] sm:$0xff]
  %v53 = vld [vmem:[%s1 + $0xb0] sm:$0xff]
  %v54 = vld [vmem:[%s1 + $0xb8] sm:$0xff]
  %v55 = vld [vmem:[%s1 + $0xc0] sm:$0xff]
  %v56 = vld [vmem:[%s1 + $0xc8] sm:$0xff]
  %v57 = vld [vmem:[%s1 + $0xd0] sm:$0xff]
  %v58 = vld [vmem:[%s1 + $0xd8] sm:$0xff]
  %v59 = vld [vmem:[%s1 + $0xe0] sm:$0xff]
  %v60 = vld [vmem:[%s1 + $0xe8] sm:$0xff]
  %v61 = vld [vmem:[%s1 + $0xf0] sm:$0xff]
  %v62 = vld [vmem:[%s1 + $0xf8] sm:$0xff]
  %v63 = vld [vmem:[%s1 + $0x100] sm:$0xff]
  %v64 = vld [vmem:[%s1 + $0x108] sm:$0xff]
  %v65 = vld [vmem:[%s1 + $0x110] sm:$0xff]
  %v66 = vld [vmem:[%s1 + $0x118] sm:$0xff]
  %v67 = vld [vmem:[%s1 + $0x120] sm:$0xff]
  %v68 = vld [vmem:[%s1 + $0x128] sm:$0xff]
  %v69 = vld [vmem:[%s1 + $0x130] sm:$0xff]
  %v70 = vld [vmem:[%s1 + $0x138] sm:$0xff]
  %v71 = vld [vmem:[%s1 + $0x140] sm:$0xff]
  %v72 = vld [vmem:[%s1 + $0x148] sm:$0xff]
  %v73 = vld [vmem:[%s1 + $0x150] sm:$0xff]
  %v74 = vld [vmem:[%s1 + $0x158] sm:$0xff]
  %v75 = vld [vmem:[%s1 + $0x160] sm:$0xff]
  %v76 = vld [vmem:[%s1 + $0x168] sm:$0xff]
  %v77 = vld [vmem:[%s1 + $0x170] sm:$0xff]
  %v78 = vld [vmem:[%s1 + $0x178] sm:$0xff]
  %v79 = vld [vmem:[%s1 + $0x180] sm:$0xff]
  %v80 = vld [vmem:[%s1 + $0x188] sm:$0xff]
  %v81 = vld [vmem:[%s1 + $0x190] sm:$0xff]
  %v82 = vld [vmem:[%s1 + $0x198] sm:$0xff]
  %v83 = vld [vmem:[%s1 + $0x1a0] sm:$0xff]
  %v84 = vld [vmem:[%s1 + $0x1a8] sm:$0xff]
  %v85 = vld [vmem:[%s1 + $0x1b0] sm:$0xff]
  %v86 = vld [vmem:[%s1 + $0x1b8] sm:$0xff]
  %v87 = vld [vmem:[%s1 + $0x1c0] sm:$0xff]
  %v88 = vld [vmem:[%s1 + $0x1c8] sm:$0xff]
  %v89 = vld [vmem:[%s1 + $0x1d0] sm:$0xff]
  %v90 = vld [vmem:[%s1 + $0x1d8] sm:$0xff]
  %v91 = vld [vmem:[%s1 + $0x1e0] sm:$0xff]
  %v92 = vld [vmem:[%s1 + $0x1e8] sm:$0xff]
  %v93 = vld [vmem:[%s1 + $0x1f0] sm:$0xff]
  %v94 = vld [vmem:[%s1 + $0x1f8] sm:$0xff]
  %v95 = vld [vmem:[%s1 + $0x200] sm:$0xff]
  %v96 = vld [vmem:[%s1 + $0x208] sm:$0xff]
  %v97 = vld [vmem:[%s1 + $0x210] sm:$0xff]
  %v98 = vld [vmem:[%s1 + $0x218] sm:$0xff]
  %v99 = vld [vmem:[%s1 + $0x220] sm:$0xff]
  %v100 = vld [vmem:[%s1 + $0x228] sm:$0xff]
  %v101 = vld [vmem:[%s1 + $0x230] sm:$0xff]
  %v102 = vld [vmem:[%s1 + $0x238] sm:$0xff]
  %v103 = vld [vmem:[%s1 + $0x240] sm:$0xff]
  %v104 = vld [vmem:[%s1 + $0x248] sm:$0xff]
  %v105 = vld [vmem:[%s1 + $0x250] sm:$0xff]
  %v106 = vld [vmem:[%s1 + $0x258] sm:$0xff]
  %v107 = vld [vmem:[%s1 + $0x260] sm:$0xff]
  %v108 = vld [vmem:[%s1 + $0x268] sm:$0xff]
  %v109 = vld [vmem:[%s1 + $0x270] sm:$0xff]
  %v110 = vld [vmem:[%s1 + $0x278] sm:$0xff]
  %v111 = vld [vmem:[%s1 + $0x280] sm:$0xff]
  %v112 = vld [vmem:[%s1 + $0x288] sm:$0xff]
  %v113 = vld [vmem:[%s1 + $0x290] sm:$0xff]
  %v114 = vld [vmem:[%s1 + $0x298] sm:$0xff]
  %v115 = vld [vmem:[%s1 + $0x2a0] sm:$0xff]
  %v116 = vld [vmem:[%s1 + $0x2a8] sm:$0xff]
  %v117 = vld [vmem:[%s1 + $0x2b0] sm:$0xff]
  %v118 = vld [vmem:[%s1 + $0x2b8] sm:$0xff]
  %v119 = vld [vmem:[%s1 + $0x2c0] sm:$0xff]
  %v120 = vld [vmem:[%s1 + $0x2c8] sm:$0xff]
  %v121 = vld [vmem:[%s1 + $0x2d0] sm:$0xff]
  %v122 = vld [vmem:[%s1 + $0x2d8] sm:$0xff]
  %v123 = vld [vmem:[%s1 + $0x2e0] sm:$0xff]
  %v124 = vld [vmem:[%s1 + $0x2e8] sm:$0xff]
  %v125 = vld [vmem:[%s1 + $0x2f0] sm:$0xff]
  %v126 = vld [vmem:[%s1 + $0x2f8] sm:$0xff]
  %v127 = vld [vmem:[%s1 + $0x300] sm:$0xff]
  %v128 = vld [vmem:[%s1 + $0x308] sm:$0xff]
  %v129 = vld [vmem:[%s1 + $0x310] sm:$0xff]
  %v130 = vld [vmem:[%s1 + $0x318] sm:$0xff]
  %v131 = vld [vmem:[%s1 + $0x320] sm:$0xff]
  %v132 = vld [vmem:[%s1 + $0x328] sm:$0xff]
  %v133 = vld [vmem:[%s1 + $0x330] sm:$0xff]
  %v134 = vld [vmem:[%s1 + $0x338] sm:$0xff]
  %v135 = vld [vmem:[%s1 + $0x340] sm:$0xff]
  %v136 = vld [vmem:[%s1 + $0x348] sm:$0xff]
  %v137 = vld [vmem:[%s1 + $0x350] sm:$0xff]
  %v138 = vld [vmem:[%s1 + $0x358] sm:$0xff]
  %v139 = vld [vmem:[%s1 + $0x360] sm:$0xff]
  %v140 = vld [vmem:[%s1 + $0x368] sm:$0xff]
  %v141 = vld [vmem:[%s1 + $0x370] sm:$0xff]
  %v142 = vld [vmem:[%s1 + $0x378] sm:$0xff]
  %v143 = vld [vmem:[%s1 + $0x380] sm:$0xff]
  %v144 = vld [vmem:[%s1 + $0x388] sm:$0xff]
  %v145 = vld [vmem:[%s1 + $0x390] sm:$0xff]
  %v146 = vld [vmem:[%s1 + $0x398] sm:$0xff]
  %v147 = vld [vmem:[%s1 + $0x3a0] sm:$0xff]
  %v148 = vld [vmem:[%s1 + $0x3a8] sm:$0xff]
  %v149 = vld [vmem:[%s1 + $0x3b0] sm:$0xff]
  %v150 = vld [vmem:[%s1 + $0x3b8] sm:$0xff]
  %v151 = vld [vmem:[%s1 + $0x3c0] sm:$0xff]
  %v152 = vld [vmem:[%s1 + $0x3c8] sm:$0xff]
  %v153 = vld [vmem:[%s1 + $0x3d0] sm:$0xff]
  %v154 = vld [vmem:[%s1 + $0x3d8] sm:$0xff]
  %v155 = vld [vmem:[%s1 + $0x3e0] sm:$0xff]
  %v156 = vld [vmem:[%s1 + $0x3e8] sm:$0xff]
  %v157 = vld [vmem:[%s1 + $0x3f0] sm:$0xff]
  %v158 = vld [vmem:[%s1 + $0x3f8] sm:$0xff]
  %v159 = vld [vmem:[%s2] sm:$0xff]
  %v161 = vlaneseq
  %v162 = vshrl.u32 %v161, 7
  %v163 = vsub.s32 0, %v162
  %v164 = vrot.slane %v159, %v163
  %v165 = vlaneseq
  %v166 = vshrl.u32 %v165, 7
  %v167 = vsub.s32 1, %v166
  %v168 = vrot.slane %v159, %v167
  %v169 = vlaneseq
  %v170 = vshrl.u32 %v169, 7
  %v171 = vsub.s32 2, %v170
  %v172 = vrot.slane %v159, %v171
  %v173 = vlaneseq
  %v174 = vshrl.u32 %v173, 7
  %v175 = vsub.s32 3, %v174
  %v176 = vrot.slane %v159, %v175
  %v177 = vlaneseq
  %v178 = vshrl.u32 %v177, 7
  %v179 = vsub.s32 4, %v178
  %v180 = vrot.slane %v159, %v179
  %v181 = vlaneseq
  %v182 = vshrl.u32 %v181, 7
  %v183 = vsub.s32 6, %v182
  %v184 = vrot.slane %v159, %v183
  %v185 = vlaneseq
  %v186 = vshrl.u32 %v185, 7
  %v187 = vsub.s32 7, %v186
  %v188 = vrot.slane %v159, %v187
  %196 = vmatprep.subr.mxu0 %v152
  %197 = vmatpush1.msra.mxu0 %v151
  %198 = vmatprep.subr.mxu0 %v144
  %199 = vmatpush1.msra.mxu0 %v143
  %200 = vmatprep.subr.mxu0 %v136
  %201 = vmatpush1.msra.mxu0 %v135
  %202 = vmatprep.subr.mxu0 %v128
  %203 = vmatpush1.msra.mxu0 %v127
  %204 = vmatprep.subr.mxu0 %v120
  %205 = vmatpush1.msra.mxu0 %v119
  %206 = vmatprep.subr.mxu0 %v112
  %207 = vmatpush1.msra.mxu0 %v111
  %208 = vmatprep.subr.mxu0 %v104
  %209 = vmatpush1.msra.mxu0 %v103
  %210 = vmatprep.subr.mxu0 %v96
  %211 = vmatpush1.msra.mxu0 %v95
  %212 = vmatprep.subr.mxu0 %v88
  %213 = vmatpush1.msra.mxu0 %v87
  %214 = vmatprep.subr.mxu0 %v80
  %215 = vmatpush1.msra.mxu0 %v79
  %216 = vmatprep.subr.mxu0 %v72
  %217 = vmatpush1.msra.mxu0 %v71
  %218 = vmatprep.subr.mxu0 %v64
  %219 = vmatpush1.msra.mxu0 %v63
  %220 = vmatprep.subr.mxu0 %v56
  %221 = vmatpush1.msra.mxu0 %v55
  %222 = vmatprep.subr.mxu0 %v48
  %223 = vmatpush1.msra.mxu0 %v47
  %224 = vmatprep.subr.mxu0 %v40
  %225 = vmatpush1.msra.mxu0 %v39
  %226 = vmatprep.subr.mxu0 %v32
  %227 = vmatpush1.msra.mxu0 %v31
  %228 = vmatprep.subr.mxu0 0.0
  %229 = vmatpush2.msra.mxu0 0.0
  %230 = vmatprep.subr.mxu0 0.0
  %231 = vmatpush2.msra.mxu0 0.0
  %232 = vmatprep.subr.mxu0 0.0
  %233 = vmatpush2.msra.mxu0 0.0
  %234 = vmatprep.subr.mxu0 0.0
  %235 = vmatpush2.msra.mxu0 0.0
  %236 = vmatprep.subr.mxu0 0.0
  %237 = vmatpush2.msra.mxu0 0.0
  %238 = vmatprep.subr.mxu0 0.0
  %239 = vmatpush2.msra.mxu0 0.0
  %240 = vmatprep.subr.mxu0 0.0
  %241 = vmatpush2.msra.mxu0 0.0
  %242 = vmatprep.subr.mxu0 0.0
  %243 = vmatpush2.msra.mxu0 0.0
  %244 = vmatprep.subr.mxu0 0.0
  %245 = vmatpush2.msra.mxu0 0.0
  %246 = vmatprep.subr.mxu0 0.0
  %247 = vmatpush2.msra.mxu0 0.0
  %248 = vmatprep.subr.mxu0 0.0
  %249 = vmatpush2.msra.mxu0 0.0
  %250 = vmatprep.subr.mxu0 0.0
  %251 = vmatpush2.msra.mxu0 0.0
  %252 = vmatprep.subr.mxu0 0.0
  %253 = vmatpush2.msra.mxu0 0.0
  %254 = vmatprep.subr.mxu0 0.0
  %255 = vmatpush2.msra.mxu0 0.0
  %256 = vmatprep.subr.mxu0 0.0
  %257 = vmatpush2.msra.mxu0 0.0
  %258 = vmatprep.subr.mxu0 0.0
  %259 = vmatpush2.msra.mxu0 0.0
  %260 = vmatprep.mubr.f32.mxu0 0.0
  %261 = vmatmul.mubr.f32.gmra.mxu0 %v23
  %v262 = vpop.f32.mrf.mxu0
  %v263 = vadd.f32 %v164, %v262
  %v264 = vpop.f32.mrf.mxu0
  %v265 = vadd.f32 %v168, %v264
  %266 = vmatprep.mubr.f32.mxu0 0.0
  %267 = vmatmul.mubr.f32.gmra.mxu0 %v24
  %v268 = vpop.f32.mrf.mxu0
  %v269 = vadd.f32 %v164, %v268
  %v270 = vpop.f32.mrf.mxu0
  %v271 = vadd.f32 %v168, %v270
  %272 = vmatprep.mubr.f32.mxu0 0.0
  %273 = vmatmul.mubr.f32.gmra.mxu0 %v25
  %v274 = vpop.f32.mrf.mxu0
  %v275 = vadd.f32 %v164, %v274
  %v276 = vpop.f32.mrf.mxu0
  %v277 = vadd.f32 %v168, %v276
  %278 = vmatprep.mubr.f32.mxu0 0.0
  %279 = vmatmul.mubr.f32.gmra.mxu0 %v26
  %v280 = vpop.f32.mrf.mxu0
  %v281 = vadd.f32 %v164, %v280
  %v282 = vpop.f32.mrf.mxu0
  %v283 = vadd.f32 %v168, %v282
  %284 = vmatprep.mubr.f32.mxu0 0.0
  %285 = vmatmul.mubr.f32.gmra.mxu0 %v27
  %v286 = vpop.f32.mrf.mxu0
  %v287 = vadd.f32 %v164, %v286
  %v288 = vpop.f32.mrf.mxu0
  %v289 = vadd.f32 %v168, %v288
  %290 = vmatprep.mubr.f32.mxu0 0.0
  %291 = vmatmul.mubr.f32.gmra.mxu0 %v28
  %v292 = vpop.f32.mrf.mxu0
  %v293 = vadd.f32 %v164, %v292
  %v294 = vpop.f32.mrf.mxu0
  %v295 = vadd.f32 %v168, %v294
  %296 = vmatprep.mubr.f32.mxu0 0.0
  %297 = vmatmul.mubr.f32.gmra.mxu0 %v29
  %v298 = vpop.f32.mrf.mxu0
  %v299 = vadd.f32 %v164, %v298
  %v300 = vpop.f32.mrf.mxu0
  %v301 = vadd.f32 %v168, %v300
  %302 = vmatprep.mubr.f32.mxu0 0.0
  %303 = vmatmul.mubr.f32.gmra.mxu0 %v30
  %v304 = vpop.f32.mrf.mxu0
  %v305 = vadd.f32 %v164, %v304
  %v306 = vpop.f32.mrf.mxu0
  %v307 = vadd.f32 %v168, %v306
  %308 = vdwg.mxu0
  %309 = vmatprep.subr.mxu0 %v154
  %310 = vmatpush1.msra.mxu0 %v153
  %311 = vmatprep.subr.mxu0 %v146
  %312 = vmatpush1.msra.mxu0 %v145
  %313 = vmatprep.subr.mxu0 %v138
  %314 = vmatpush1.msra.mxu0 %v137
  %315 = vmatprep.subr.mxu0 %v130
  %316 = vmatpush1.msra.mxu0 %v129
  %317 = vmatprep.subr.mxu0 %v122
  %318 = vmatpush1.msra.mxu0 %v121
  %319 = vmatprep.subr.mxu0 %v114
  %320 = vmatpush1.msra.mxu0 %v113
  %321 = vmatprep.subr.mxu0 %v106
  %322 = vmatpush1.msra.mxu0 %v105
  %323 = vmatprep.subr.mxu0 %v98
  %324 = vmatpush1.msra.mxu0 %v97
  %325 = vmatprep.subr.mxu0 %v90
  %326 = vmatpush1.msra.mxu0 %v89
  %327 = vmatprep.subr.mxu0 %v82
  %328 = vmatpush1.msra.mxu0 %v81
  %329 = vmatprep.subr.mxu0 %v74
  %330 = vmatpush1.msra.mxu0 %v73
  %331 = vmatprep.subr.mxu0 %v66
  %332 = vmatpush1.msra.mxu0 %v65
  %333 = vmatprep.subr.mxu0 %v58
  %334 = vmatpush1.msra.mxu0 %v57
  %335 = vmatprep.subr.mxu0 %v50
  %336 = vmatpush1.msra.mxu0 %v49
  %337 = vmatprep.subr.mxu0 %v42
  %338 = vmatpush1.msra.mxu0 %v41
  %339 = vmatprep.subr.mxu0 %v34
  %340 = vmatpush1.msra.mxu0 %v33
  %341 = vmatprep.subr.mxu0 0.0
  %342 = vmatpush2.msra.mxu0 0.0
  %343 = vmatprep.subr.mxu0 0.0
  %344 = vmatpush2.msra.mxu0 0.0
  %345 = vmatprep.subr.mxu0 0.0
  %346 = vmatpush2.msra.mxu0 0.0
  %347 = vmatprep.subr.mxu0 0.0
  %348 = vmatpush2.msra.mxu0 0.0
  %349 = vmatprep.subr.mxu0 0.0
  %350 = vmatpush2.msra.mxu0 0.0
  %351 = vmatprep.subr.mxu0 0.0
  %352 = vmatpush2.msra.mxu0 0.0
  %353 = vmatprep.subr.mxu0 0.0
  %354 = vmatpush2.msra.mxu0 0.0
  %355 = vmatprep.subr.mxu0 0.0
  %356 = vmatpush2.msra.mxu0 0.0
  %357 = vmatprep.subr.mxu0 0.0
  %358 = vmatpush2.msra.mxu0 0.0
  %359 = vmatprep.subr.mxu0 0.0
  %360 = vmatpush2.msra.mxu0 0.0
  %361 = vmatprep.subr.mxu0 0.0
  %362 = vmatpush2.msra.mxu0 0.0
  %363 = vmatprep.subr.mxu0 0.0
  %364 = vmatpush2.msra.mxu0 0.0
  %365 = vmatprep.subr.mxu0 0.0
  %366 = vmatpush2.msra.mxu0 0.0
  %367 = vmatprep.subr.mxu0 0.0
  %368 = vmatpush2.msra.mxu0 0.0
  %369 = vmatprep.subr.mxu0 0.0
  %370 = vmatpush2.msra.mxu0 0.0
  %371 = vmatprep.subr.mxu0 0.0
  %372 = vmatpush2.msra.mxu0 0.0
  %373 = vmatprep.mubr.f32.mxu0 0.0
  %374 = vmatmul.mubr.f32.gmra.mxu0 %v23
  %v375 = vpop.f32.mrf.mxu0
  %v376 = vadd.f32 %v172, %v375
  %v377 = vpop.f32.mrf.mxu0
  %v378 = vadd.f32 %v176, %v377
  %379 = vmatprep.mubr.f32.mxu0 0.0
  %380 = vmatmul.mubr.f32.gmra.mxu0 %v24
  %v381 = vpop.f32.mrf.mxu0
  %v382 = vadd.f32 %v172, %v381
  %v383 = vpop.f32.mrf.mxu0
  %v384 = vadd.f32 %v176, %v383
  %385 = vmatprep.mubr.f32.mxu0 0.0
  %386 = vmatmul.mubr.f32.gmra.mxu0 %v25
  %v387 = vpop.f32.mrf.mxu0
  %v388 = vadd.f32 %v172, %v387
  %v389 = vpop.f32.mrf.mxu0
  %v390 = vadd.f32 %v176, %v389
  %391 = vmatprep.mubr.f32.mxu0 0.0
  %392 = vmatmul.mubr.f32.gmra.mxu0 %v26
  %v393 = vpop.f32.mrf.mxu0
  %v394 = vadd.f32 %v172, %v393
  %v395 = vpop.f32.mrf.mxu0
  %v396 = vadd.f32 %v176, %v395
  %397 = vmatprep.mubr.f32.mxu0 0.0
  %398 = vmatmul.mubr.f32.gmra.mxu0 %v27
  %v399 = vpop.f32.mrf.mxu0
  %v400 = vadd.f32 %v172, %v399
  %v401 = vpop.f32.mrf.mxu0
  %v402 = vadd.f32 %v176, %v401
  %403 = vmatprep.mubr.f32.mxu0 0.0
  %404 = vmatmul.mubr.f32.gmra.mxu0 %v28
  %v405 = vpop.f32.mrf.mxu0
  %v406 = vadd.f32 %v172, %v405
  %v407 = vpop.f32.mrf.mxu0
  %v408 = vadd.f32 %v176, %v407
  %409 = vmatprep.mubr.f32.mxu0 0.0
  %410 = vmatmul.mubr.f32.gmra.mxu0 %v29
  %v411 = vpop.f32.mrf.mxu0
  %v412 = vadd.f32 %v172, %v411
  %v413 = vpop.f32.mrf.mxu0
  %v414 = vadd.f32 %v176, %v413
  %415 = vmatprep.mubr.f32.mxu0 0.0
  %416 = vmatmul.mubr.f32.gmra.mxu0 %v30
  %v417 = vpop.f32.mrf.mxu0
  %v418 = vadd.f32 %v172, %v417
  %v419 = vpop.f32.mrf.mxu0
  %v420 = vadd.f32 %v176, %v419
  %421 = vdwg.mxu0
  %422 = vmatprep.subr.mxu0 %v156
  %423 = vmatpush1.msra.mxu0 %v155
  %424 = vmatprep.subr.mxu0 %v148
  %425 = vmatpush1.msra.mxu0 %v147
  %426 = vmatprep.subr.mxu0 %v140
  %427 = vmatpush1.msra.mxu0 %v139
  %428 = vmatprep.subr.mxu0 %v132
  %429 = vmatpush1.msra.mxu0 %v131
  %430 = vmatprep.subr.mxu0 %v124
  %431 = vmatpush1.msra.mxu0 %v123
  %432 = vmatprep.subr.mxu0 %v116
  %433 = vmatpush1.msra.mxu0 %v115
  %434 = vmatprep.subr.mxu0 %v108
  %435 = vmatpush1.msra.mxu0 %v107
  %436 = vmatprep.subr.mxu0 %v100
  %437 = vmatpush1.msra.mxu0 %v99
  %438 = vmatprep.subr.mxu0 %v92
  %439 = vmatpush1.msra.mxu0 %v91
  %440 = vmatprep.subr.mxu0 %v84
  %441 = vmatpush1.msra.mxu0 %v83
  %442 = vmatprep.subr.mxu0 %v76
  %443 = vmatpush1.msra.mxu0 %v75
  %444 = vmatprep.subr.mxu0 %v68
  %445 = vmatpush1.msra.mxu0 %v67
  %446 = vmatprep.subr.mxu0 %v60
  %447 = vmatpush1.msra.mxu0 %v59
  %448 = vmatprep.subr.mxu0 %v52
  %449 = vmatpush1.msra.mxu0 %v51
  %450 = vmatprep.subr.mxu0 %v44
  %451 = vmatpush1.msra.mxu0 %v43
  %452 = vmatprep.subr.mxu0 %v36
  %453 = vmatpush1.msra.mxu0 %v35
  %454 = vmatprep.subr.mxu0 0.0
  %455 = vmatpush2.msra.mxu0 0.0
  %456 = vmatprep.subr.mxu0 0.0
  %457 = vmatpush2.msra.mxu0 0.0
  %458 = vmatprep.subr.mxu0 0.0
  %459 = vmatpush2.msra.mxu0 0.0
  %460 = vmatprep.subr.mxu0 0.0
  %461 = vmatpush2.msra.mxu0 0.0
  %462 = vmatprep.subr.mxu0 0.0
  %463 = vmatpush2.msra.mxu0 0.0
  %464 = vmatprep.subr.mxu0 0.0
  %465 = vmatpush2.msra.mxu0 0.0
  %466 = vmatprep.subr.mxu0 0.0
  %467 = vmatpush2.msra.mxu0 0.0
  %468 = vmatprep.subr.mxu0 0.0
  %469 = vmatpush2.msra.mxu0 0.0
  %470 = vmatprep.subr.mxu0 0.0
  %471 = vmatpush2.msra.mxu0 0.0
  %472 = vmatprep.subr.mxu0 0.0
  %473 = vmatpush2.msra.mxu0 0.0
  %474 = vmatprep.subr.mxu0 0.0
  %475 = vmatpush2.msra.mxu0 0.0
  %476 = vmatprep.subr.mxu0 0.0
  %477 = vmatpush2.msra.mxu0 0.0
  %478 = vmatprep.subr.mxu0 0.0
  %479 = vmatpush2.msra.mxu0 0.0
  %480 = vmatprep.subr.mxu0 0.0
  %481 = vmatpush2.msra.mxu0 0.0
  %482 = vmatprep.subr.mxu0 0.0
  %483 = vmatpush2.msra.mxu0 0.0
  %484 = vmatprep.subr.mxu0 0.0
  %485 = vmatpush2.msra.mxu0 0.0
  %486 = vmatprep.mubr.f32.mxu0 0.0
  %487 = vmatmul.mubr.f32.gmra.mxu0 %v23
  %v488 = vpop.f32.mrf.mxu0
  %v489 = vpop.f32.mrf.mxu0
  %490 = vmatprep.mubr.f32.mxu0 0.0
  %491 = vmatmul.mubr.f32.gmra.mxu0 %v24
  %v492 = vpop.f32.mrf.mxu0
  %v493 = vpop.f32.mrf.mxu0
  %494 = vmatprep.mubr.f32.mxu0 0.0
  %495 = vmatmul.mubr.f32.gmra.mxu0 %v25
  %v496 = vpop.f32.mrf.mxu0
  %v497 = vpop.f32.mrf.mxu0
  %498 = vmatprep.mubr.f32.mxu0 0.0
  %499 = vmatmul.mubr.f32.gmra.mxu0 %v26
  %v500 = vpop.f32.mrf.mxu0
  %v501 = vpop.f32.mrf.mxu0
  %502 = vmatprep.mubr.f32.mxu0 0.0
  %503 = vmatmul.mubr.f32.gmra.mxu0 %v27
  %v504 = vpop.f32.mrf.mxu0
  %v505 = vpop.f32.mrf.mxu0
  %506 = vmatprep.mubr.f32.mxu0 0.0
  %507 = vmatmul.mubr.f32.gmra.mxu0 %v28
  %v508 = vpop.f32.mrf.mxu0
  %v509 = vpop.f32.mrf.mxu0
  %510 = vmatprep.mubr.f32.mxu0 0.0
  %511 = vmatmul.mubr.f32.gmra.mxu0 %v29
  %v512 = vpop.f32.mrf.mxu0
  %v513 = vpop.f32.mrf.mxu0
  %514 = vmatprep.mubr.f32.mxu0 0.0
  %515 = vmatmul.mubr.f32.gmra.mxu0 %v30
  %v516 = vpop.f32.mrf.mxu0
  %v517 = vadd.f32 %v180, %v516
  %v518 = vpop.f32.mrf.mxu0
  %519 = vdwg.mxu0
  %520 = vmatprep.subr.mxu0 %v158
  %521 = vmatpush1.msra.mxu0 %v157
  %522 = vmatprep.subr.mxu0 %v150
  %523 = vmatpush1.msra.mxu0 %v149
  %524 = vmatprep.subr.mxu0 %v142
  %525 = vmatpush1.msra.mxu0 %v141
  %526 = vmatprep.subr.mxu0 %v134
  %527 = vmatpush1.msra.mxu0 %v133
  %528 = vmatprep.subr.mxu0 %v126
  %529 = vmatpush1.msra.mxu0 %v125
  %530 = vmatprep.subr.mxu0 %v118
  %531 = vmatpush1.msra.mxu0 %v117
  %532 = vmatprep.subr.mxu0 %v110
  %533 = vmatpush1.msra.mxu0 %v109
  %534 = vmatprep.subr.mxu0 %v102
  %535 = vmatpush1.msra.mxu0 %v101
  %536 = vmatprep.subr.mxu0 %v94
  %537 = vmatpush1.msra.mxu0 %v93
  %538 = vmatprep.subr.mxu0 %v86
  %539 = vmatpush1.msra.mxu0 %v85
  %540 = vmatprep.subr.mxu0 %v78
  %541 = vmatpush1.msra.mxu0 %v77
  %542 = vmatprep.subr.mxu0 %v70
  %543 = vmatpush1.msra.mxu0 %v69
  %544 = vmatprep.subr.mxu0 %v62
  %545 = vmatpush1.msra.mxu0 %v61
  %546 = vmatprep.subr.mxu0 %v54
  %547 = vmatpush1.msra.mxu0 %v53
  %548 = vmatprep.subr.mxu0 %v46
  %549 = vmatpush1.msra.mxu0 %v45
  %550 = vmatprep.subr.mxu0 %v38
  %551 = vmatpush1.msra.mxu0 %v37
  %552 = vmatprep.subr.mxu0 0.0
  %553 = vmatpush2.msra.mxu0 0.0
  %554 = vmatprep.subr.mxu0 0.0
  %555 = vmatpush2.msra.mxu0 0.0
  %556 = vmatprep.subr.mxu0 0.0
  %557 = vmatpush2.msra.mxu0 0.0
  %558 = vmatprep.subr.mxu0 0.0
  %559 = vmatpush2.msra.mxu0 0.0
  %560 = vmatprep.subr.mxu0 0.0
  %561 = vmatpush2.msra.mxu0 0.0
  %562 = vmatprep.subr.mxu0 0.0
  %563 = vmatpush2.msra.mxu0 0.0
  %564 = vmatprep.subr.mxu0 0.0
  %565 = vmatpush2.msra.mxu0 0.0
  %566 = vmatprep.subr.mxu0 0.0
  %567 = vmatpush2.msra.mxu0 0.0
  %568 = vmatprep.subr.mxu0 0.0
  %569 = vmatpush2.msra.mxu0 0.0
  %570 = vmatprep.subr.mxu0 0.0
  %571 = vmatpush2.msra.mxu0 0.0
  %572 = vmatprep.subr.mxu0 0.0
  %573 = vmatpush2.msra.mxu0 0.0
  %574 = vmatprep.subr.mxu0 0.0
  %575 = vmatpush2.msra.mxu0 0.0
  %576 = vmatprep.subr.mxu0 0.0
  %577 = vmatpush2.msra.mxu0 0.0
  %578 = vmatprep.subr.mxu0 0.0
  %579 = vmatpush2.msra.mxu0 0.0
  %580 = vmatprep.subr.mxu0 0.0
  %581 = vmatpush2.msra.mxu0 0.0
  %582 = vmatprep.subr.mxu0 0.0
  %583 = vmatpush2.msra.mxu0 0.0
  %584 = vmatprep.mubr.f32.mxu0 0.0
  %585 = vmatmul.mubr.f32.gmra.mxu0 %v23
  %v586 = vpop.f32.mrf.mxu0
  %v587 = vpop.f32.mrf.mxu0
  %588 = vmatprep.mubr.f32.mxu0 0.0
  %589 = vmatmul.mubr.f32.gmra.mxu0 %v24
  %v590 = vpop.f32.mrf.mxu0
  %v591 = vpop.f32.mrf.mxu0
  %592 = vmatprep.mubr.f32.mxu0 0.0
  %593 = vmatmul.mubr.f32.gmra.mxu0 %v25
  %v594 = vpop.f32.mrf.mxu0
  %v595 = vpop.f32.mrf.mxu0
  %596 = vmatprep.mubr.f32.mxu0 0.0
  %597 = vmatmul.mubr.f32.gmra.mxu0 %v26
  %v598 = vpop.f32.mrf.mxu0
  %v599 = vpop.f32.mrf.mxu0
  %600 = vmatprep.mubr.f32.mxu0 0.0
  %601 = vmatmul.mubr.f32.gmra.mxu0 %v27
  %v602 = vpop.f32.mrf.mxu0
  %v603 = vpop.f32.mrf.mxu0
  %604 = vmatprep.mubr.f32.mxu0 0.0
  %605 = vmatmul.mubr.f32.gmra.mxu0 %v28
  %v606 = vpop.f32.mrf.mxu0
  %v607 = vpop.f32.mrf.mxu0
  %608 = vmatprep.mubr.f32.mxu0 0.0
  %609 = vmatmul.mubr.f32.gmra.mxu0 %v29
  %v610 = vpop.f32.mrf.mxu0
  %v611 = vpop.f32.mrf.mxu0
  %612 = vmatprep.mubr.f32.mxu0 0.0
  %613 = vmatmul.mubr.f32.gmra.mxu0 %v30
  %v614 = vpop.f32.mrf.mxu0
  %v615 = vadd.f32 %v184, %v614
  %v616 = vpop.f32.mrf.mxu0
  %v617 = vadd.f32 %v188, %v616
  %618 = vdwg.mxu0
  %v619 = vld [vmem:[%s3] sm:$0xff]
  %v620 = vld [vmem:[%s3 + $0x8] sm:$0xff]
  %v621 = vld [vmem:[%s3 + $0x10] sm:$0xff]
  %v622 = vld [vmem:[%s3 + $0x18] sm:$0xff]
  %v623 = vld [vmem:[%s3 + $0x20] sm:$0xff]
  %v624 = vld [vmem:[%s3 + $0x28] sm:$0xff]
  %v625 = vld [vmem:[%s3 + $0x30] sm:$0xff]
  %v626 = vld [vmem:[%s3 + $0x38] sm:$0xff]
  %v627 = vld [vmem:[%s3 + $0x40] sm:$0xff]
  %v628 = vld [vmem:[%s3 + $0x48] sm:$0xff]
  %v629 = vld [vmem:[%s3 + $0x50] sm:$0xff]
  %v630 = vld [vmem:[%s3 + $0x58] sm:$0xff]
  %v631 = vld [vmem:[%s3 + $0x60] sm:$0xff]
  %v632 = vld [vmem:[%s3 + $0x68] sm:$0xff]
  %v633 = vld [vmem:[%s3 + $0x70] sm:$0xff]
  %v634 = vld [vmem:[%s3 + $0x78] sm:$0xff]
  %v635 = vld [vmem:[%s3 + $0x80] sm:$0xff]
  %v636 = vld [vmem:[%s3 + $0x88] sm:$0xff]
  %v637 = vld [vmem:[%s3 + $0x90] sm:$0xff]
  %v638 = vld [vmem:[%s3 + $0x98] sm:$0xff]
  %v639 = vld [vmem:[%s3 + $0xa0] sm:$0xff]
  %v640 = vld [vmem:[%s3 + $0xa8] sm:$0xff]
  %v641 = vld [vmem:[%s3 + $0xb0] sm:$0xff]
  %v642 = vld [vmem:[%s3 + $0xb8] sm:$0xff]
  %v643 = vld [vmem:[%s3 + $0xc0] sm:$0xff]
  %v644 = vld [vmem:[%s3 + $0xc8] sm:$0xff]
  %v645 = vld [vmem:[%s3 + $0xd0] sm:$0xff]
  %v646 = vld [vmem:[%s3 + $0xd8] sm:$0xff]
  %v647 = vld [vmem:[%s3 + $0xe0] sm:$0xff]
  %v648 = vld [vmem:[%s3 + $0xe8] sm:$0xff]
  %v649 = vld [vmem:[%s3 + $0xf0] sm:$0xff]
  %v650 = vld [vmem:[%s3 + $0xf8] sm:$0xff]
  %v651 = vld [vmem:[%s3 + $0x100] sm:$0xff]
  %v652 = vld [vmem:[%s3 + $0x108] sm:$0xff]
  %v653 = vld [vmem:[%s3 + $0x110] sm:$0xff]
  %v654 = vld [vmem:[%s3 + $0x118] sm:$0xff]
  %v655 = vld [vmem:[%s3 + $0x120] sm:$0xff]
  %v656 = vld [vmem:[%s3 + $0x128] sm:$0xff]
  %v657 = vld [vmem:[%s3 + $0x130] sm:$0xff]
  %v658 = vld [vmem:[%s3 + $0x138] sm:$0xff]
  %v659 = vld [vmem:[%s3 + $0x140] sm:$0xff]
  %v660 = vld [vmem:[%s3 + $0x148] sm:$0xff]
  %v661 = vld [vmem:[%s3 + $0x150] sm:$0xff]
  %v662 = vld [vmem:[%s3 + $0x158] sm:$0xff]
  %v663 = vld [vmem:[%s3 + $0x160] sm:$0xff]
  %v664 = vld [vmem:[%s3 + $0x168] sm:$0xff]
  %v665 = vld [vmem:[%s3 + $0x170] sm:$0xff]
  %v666 = vld [vmem:[%s3 + $0x178] sm:$0xff]
  %v667 = vld [vmem:[%s3 + $0x180] sm:$0xff]
  %v668 = vld [vmem:[%s3 + $0x188] sm:$0xff]
  %v669 = vld [vmem:[%s3 + $0x190] sm:$0xff]
  %v670 = vld [vmem:[%s3 + $0x198] sm:$0xff]
  %v671 = vld [vmem:[%s3 + $0x1a0] sm:$0xff]
  %v672 = vld [vmem:[%s3 + $0x1a8] sm:$0xff]
  %v673 = vld [vmem:[%s3 + $0x1b0] sm:$0xff]
  %v674 = vld [vmem:[%s3 + $0x1b8] sm:$0xff]
  %v675 = vld [vmem:[%s3 + $0x1c0] sm:$0xff]
  %v676 = vld [vmem:[%s3 + $0x1c8] sm:$0xff]
  %v677 = vld [vmem:[%s3 + $0x1d0] sm:$0xff]
  %v678 = vld [vmem:[%s3 + $0x1d8] sm:$0xff]
  %v679 = vld [vmem:[%s3 + $0x1e0] sm:$0xff]
  %v680 = vld [vmem:[%s3 + $0x1e8] sm:$0xff]
  %v681 = vld [vmem:[%s3 + $0x1f0] sm:$0xff]
  %v682 = vld [vmem:[%s3 + $0x1f8] sm:$0xff]
  %683 = vmatprep.subr.mxu0 %v680
  %684 = vmatpush1.msra.mxu0 %v679
  %685 = vmatprep.subr.mxu0 %v676
  %686 = vmatpush1.msra.mxu0 %v675
  %687 = vmatprep.subr.mxu0 %v672
  %688 = vmatpush1.msra.mxu0 %v671
  %689 = vmatprep.subr.mxu0 %v668
  %690 = vmatpush1.msra.mxu0 %v667
  %691 = vmatprep.subr.mxu0 %v664
  %692 = vmatpush1.msra.mxu0 %v663
  %693 = vmatprep.subr.mxu0 %v660
  %694 = vmatpush1.msra.mxu0 %v659
  %695 = vmatprep.subr.mxu0 %v656
  %696 = vmatpush1.msra.mxu0 %v655
  %697 = vmatprep.subr.mxu0 %v652
  %698 = vmatpush1.msra.mxu0 %v651
  %699 = vmatprep.subr.mxu0 %v648
  %700 = vmatpush1.msra.mxu0 %v647
  %701 = vmatprep.subr.mxu0 %v644
  %702 = vmatpush1.msra.mxu0 %v643
  %703 = vmatprep.subr.mxu0 %v640
  %704 = vmatpush1.msra.mxu0 %v639
  %705 = vmatprep.subr.mxu0 %v636
  %706 = vmatpush1.msra.mxu0 %v635
  %707 = vmatprep.subr.mxu0 %v632
  %708 = vmatpush1.msra.mxu0 %v631
  %709 = vmatprep.subr.mxu0 %v628
  %710 = vmatpush1.msra.mxu0 %v627
  %711 = vmatprep.subr.mxu0 %v624
  %712 = vmatpush1.msra.mxu0 %v623
  %713 = vmatprep.subr.mxu0 %v620
  %714 = vmatpush1.msra.mxu0 %v619
  %715 = vmatprep.subr.mxu0 0.0
  %716 = vmatpush2.msra.mxu0 0.0
  %717 = vmatprep.subr.mxu0 0.0
  %718 = vmatpush2.msra.mxu0 0.0
  %719 = vmatprep.subr.mxu0 0.0
  %720 = vmatpush2.msra.mxu0 0.0
  %721 = vmatprep.subr.mxu0 0.0
  %722 = vmatpush2.msra.mxu0 0.0
  %723 = vmatprep.subr.mxu0 0.0
  %724 = vmatpush2.msra.mxu0 0.0
  %725 = vmatprep.subr.mxu0 0.0
  %726 = vmatpush2.msra.mxu0 0.0
  %727 = vmatprep.subr.mxu0 0.0
  %728 = vmatpush2.msra.mxu0 0.0
  %729 = vmatprep.subr.mxu0 0.0
  %730 = vmatpush2.msra.mxu0 0.0
  %731 = vmatprep.subr.mxu0 0.0
  %732 = vmatpush2.msra.mxu0 0.0
  %733 = vmatprep.subr.mxu0 0.0
  %734 = vmatpush2.msra.mxu0 0.0
  %735 = vmatprep.subr.mxu0 0.0
  %736 = vmatpush2.msra.mxu0 0.0
  %737 = vmatprep.subr.mxu0 0.0
  %738 = vmatpush2.msra.mxu0 0.0
  %739 = vmatprep.subr.mxu0 0.0
  %740 = vmatpush2.msra.mxu0 0.0
  %741 = vmatprep.subr.mxu0 0.0
  %742 = vmatpush2.msra.mxu0 0.0
  %743 = vmatprep.subr.mxu0 0.0
  %744 = vmatpush2.msra.mxu0 0.0
  %745 = vmatprep.subr.mxu0 0.0
  %746 = vmatpush2.msra.mxu0 0.0
  %747 = vmatprep.mubr.f32.mxu0 0.0
  %748 = vmatmul.mubr.f32.gmra.mxu0 0.0
  %v749 = vpop.f32.mrf.mxu0
  %v750 = vadd.f32 0.0, %v749
  %v751 = vpop.f32.mrf.mxu0
  %v752 = vadd.f32 0.0, %v751
  %753 = vdwg.mxu0
  %754 = vmatprep.subr.mxu0 %v682
  %755 = vmatpush1.msra.mxu0 %v681
  %756 = vmatprep.subr.mxu0 %v678
  %757 = vmatpush1.msra.mxu0 %v677
  %758 = vmatprep.subr.mxu0 %v674
  %759 = vmatpush1.msra.mxu0 %v673
  %760 = vmatprep.subr.mxu0 %v670
  %761 = vmatpush1.msra.mxu0 %v669
  %762 = vmatprep.subr.mxu0 %v666
  %763 = vmatpush1.msra.mxu0 %v665
  %764 = vmatprep.subr.mxu0 %v662
  %765 = vmatpush1.msra.mxu0 %v661
  %766 = vmatprep.subr.mxu0 %v658
  %767 = vmatpush1.msra.mxu0 %v657
  %768 = vmatprep.subr.mxu0 %v654
  %769 = vmatpush1.msra.mxu0 %v653
  %770 = vmatprep.subr.mxu0 %v650
  %771 = vmatpush1.msra.mxu0 %v649
  %772 = vmatprep.subr.mxu0 %v646
  %773 = vmatpush1.msra.mxu0 %v645
  %774 = vmatprep.subr.mxu0 %v642
  %775 = vmatpush1.msra.mxu0 %v641
  %776 = vmatprep.subr.mxu0 %v638
  %777 = vmatpush1.msra.mxu0 %v637
  %778 = vmatprep.subr.mxu0 %v634
  %779 = vmatpush1.msra.mxu0 %v633
  %780 = vmatprep.subr.mxu0 %v630
  %781 = vmatpush1.msra.mxu0 %v629
  %782 = vmatprep.subr.mxu0 %v626
  %783 = vmatpush1.msra.mxu0 %v625
  %784 = vmatprep.subr.mxu0 %v622
  %785 = vmatpush1.msra.mxu0 %v621
  %786 = vmatprep.subr.mxu0 0.0
  %787 = vmatpush2.msra.mxu0 0.0
  %788 = vmatprep.subr.mxu0 0.0
  %789 = vmatpush2.msra.mxu0 0.0
  %790 = vmatprep.subr.mxu0 0.0
  %791 = vmatpush2.msra.mxu0 0.0
  %792 = vmatprep.subr.mxu0 0.0
  %793 = vmatpush2.msra.mxu0 0.0
  %794 = vmatprep.subr.mxu0 0.0
  %795 = vmatpush2.msra.mxu0 0.0
  %796 = vmatprep.subr.mxu0 0.0
  %797 = vmatpush2.msra.mxu0 0.0
  %798 = vmatprep.subr.mxu0 0.0
  %799 = vmatpush2.msra.mxu0 0.0
  %800 = vmatprep.subr.mxu0 0.0
  %801 = vmatpush2.msra.mxu0 0.0
  %802 = vmatprep.subr.mxu0 0.0
  %803 = vmatpush2.msra.mxu0 0.0
  %804 = vmatprep.subr.mxu0 0.0
  %805 = vmatpush2.msra.mxu0 0.0
  %806 = vmatprep.subr.mxu0 0.0
  %807 = vmatpush2.msra.mxu0 0.0
  %808 = vmatprep.subr.mxu0 0.0
  %809 = vmatpush2.msra.mxu0 0.0
  %810 = vmatprep.subr.mxu0 0.0
  %811 = vmatpush2.msra.mxu0 0.0
  %812 = vmatprep.subr.mxu0 0.0
  %813 = vmatpush2.msra.mxu0 0.0
  %814 = vmatprep.subr.mxu0 0.0
  %815 = vmatpush2.msra.mxu0 0.0
  %816 = vmatprep.subr.mxu0 0.0
  %817 = vmatpush2.msra.mxu0 0.0
  %818 = vmatprep.mubr.f32.mxu0 0.0
  %819 = vmatmul.mubr.f32.gmra.mxu0 0.0
  %v820 = vpop.f32.mrf.mxu0
  %v821 = vadd.f32 0.0, %v820
  %v822 = vpop.f32.mrf.mxu0
  %v823 = vadd.f32 0.0, %v822
  %824 = vdwg.mxu0
  %v825 = vadd.f32 %v263, %v750
  %v826 = vadd.f32 %v265, %v752
  %v827 = vadd.f32 %v376, %v821
  %v828 = vadd.f32 %v378, %v823
  %v829 = vxor.u32 %v825, 2147483648
  %v830 = vxor.u32 %v826, 2147483648
  %v831 = vxor.u32 %v827, 2147483648
  %v832 = vmul.f32 %v829, 1.442695
  %v833 = vpow.pop %v832
  %v834 = vmul.f32 %v830, 1.442695
  %v835 = vpow.pop %v834
  %v836 = vmul.f32 %v831, 1.442695
  %v837 = vpow.pop %v836
  %v838 = vadd.f32 %v833, 1.0
  %v839 = vadd.f32 %v835, 1.0
  %v840 = vadd.f32 %v837, 1.0
  %v841 = vrcp.pop %v838
  %v842 = vmul.f32 1.0, %v841
  %v843 = vrcp.pop %v839
  %v844 = vmul.f32 1.0, %v843
  %v845 = vrcp.pop %v840
  %v846 = vmul.f32 1.0, %v845
  %v847 = vtanh.pop %v828
  %v848 = vmul.f32 %v844, 0.0
  %v849 = vmul.f32 %v842, %v847
  %v850 = vadd.f32 %v848, %v849
  %v851 = vtanh.pop %v850
  %v852 = vmul.f32 %v846, %v851
  %853 = vmatprep.subr.mxu0 %v680
  %854 = vmatpush1.msra.mxu0 %v679
  %855 = vmatprep.subr.mxu0 %v676
  %856 = vmatpush1.msra.mxu0 %v675
  %857 = vmatprep.subr.mxu0 %v672
  %858 = vmatpush1.msra.mxu0 %v671
  %859 = vmatprep.subr.mxu0 %v668
  %860 = vmatpush1.msra.mxu0 %v667
  %861 = vmatprep.subr.mxu0 %v664
  %862 = vmatpush1.msra.mxu0 %v663
  %863 = vmatprep.subr.mxu0 %v660
  %864 = vmatpush1.msra.mxu0 %v659
  %865 = vmatprep.subr.mxu0 %v656
  %866 = vmatpush1.msra.mxu0 %v655
  %867 = vmatprep.subr.mxu0 %v652
  %868 = vmatpush1.msra.mxu0 %v651
  %869 = vmatprep.subr.mxu0 %v648
  %870 = vmatpush1.msra.mxu0 %v647
  %871 = vmatprep.subr.mxu0 %v644
  %872 = vmatpush1.msra.mxu0 %v643
  %873 = vmatprep.subr.mxu0 %v640
  %874 = vmatpush1.msra.mxu0 %v639
  %875 = vmatprep.subr.mxu0 %v636
  %876 = vmatpush1.msra.mxu0 %v635
  %877 = vmatprep.subr.mxu0 %v632
  %878 = vmatpush1.msra.mxu0 %v631
  %879 = vmatprep.subr.mxu0 %v628
  %880 = vmatpush1.msra.mxu0 %v627
  %881 = vmatprep.subr.mxu0 %v624
  %882 = vmatpush1.msra.mxu0 %v623
  %883 = vmatprep.subr.mxu0 %v620
  %884 = vmatpush1.msra.mxu0 %v619
  %885 = vmatprep.subr.mxu0 0.0
  %886 = vmatpush2.msra.mxu0 0.0
  %887 = vmatprep.subr.mxu0 0.0
  %888 = vmatpush2.msra.mxu0 0.0
  %889 = vmatprep.subr.mxu0 0.0
  %890 = vmatpush2.msra.mxu0 0.0
  %891 = vmatprep.subr.mxu0 0.0
  %892 = vmatpush2.msra.mxu0 0.0
  %893 = vmatprep.subr.mxu0 0.0
  %894 = vmatpush2.msra.mxu0 0.0
  %895 = vmatprep.subr.mxu0 0.0
  %896 = vmatpush2.msra.mxu0 0.0
  %897 = vmatprep.subr.mxu0 0.0
  %898 = vmatpush2.msra.mxu0 0.0
  %899 = vmatprep.subr.mxu0 0.0
  %900 = vmatpush2.msra.mxu0 0.0
  %901 = vmatprep.subr.mxu0 0.0
  %902 = vmatpush2.msra.mxu0 0.0
  %903 = vmatprep.subr.mxu0 0.0
  %904 = vmatpush2.msra.mxu0 0.0
  %905 = vmatprep.subr.mxu0 0.0
  %906 = vmatpush2.msra.mxu0 0.0
  %907 = vmatprep.subr.mxu0 0.0
  %908 = vmatpush2.msra.mxu0 0.0
  %909 = vmatprep.subr.mxu0 0.0
  %910 = vmatpush2.msra.mxu0 0.0
  %911 = vmatprep.subr.mxu0 0.0
  %912 = vmatpush2.msra.mxu0 0.0
  %913 = vmatprep.subr.mxu0 0.0
  %914 = vmatpush2.msra.mxu0 0.0
  %915 = vmatprep.subr.mxu0 0.0
  %916 = vmatpush2.msra.mxu0 0.0
  %917 = vmatprep.mubr.f32.mxu0 0.0
  %918 = vmatmul.mubr.f32.gmra.mxu0 %v852
  %v919 = vpop.f32.mrf.mxu0
  %v920 = vadd.f32 0.0, %v919
  %v921 = vpop.f32.mrf.mxu0
  %v922 = vadd.f32 0.0, %v921
  %923 = vdwg.mxu0
  %924 = vmatprep.subr.mxu0 %v682
  %925 = vmatpush1.msra.mxu0 %v681
  %926 = vmatprep.subr.mxu0 %v678
  %927 = vmatpush1.msra.mxu0 %v677
  %928 = vmatprep.subr.mxu0 %v674
  %929 = vmatpush1.msra.mxu0 %v673
  %930 = vmatprep.subr.mxu0 %v670
  %931 = vmatpush1.msra.mxu0 %v669
  %932 = vmatprep.subr.mxu0 %v666
  %933 = vmatpush1.msra.mxu0 %v665
  %934 = vmatprep.subr.mxu0 %v662
  %935 = vmatpush1.msra.mxu0 %v661
  %936 = vmatprep.subr.mxu0 %v658
  %937 = vmatpush1.msra.mxu0 %v657
  %938 = vmatprep.subr.mxu0 %v654
  %939 = vmatpush1.msra.mxu0 %v653
  %940 = vmatprep.subr.mxu0 %v650
  %941 = vmatpush1.msra.mxu0 %v649
  %942 = vmatprep.subr.mxu0 %v646
  %943 = vmatpush1.msra.mxu0 %v645
  %944 = vmatprep.subr.mxu0 %v642
  %945 = vmatpush1.msra.mxu0 %v641
  %946 = vmatprep.subr.mxu0 %v638
  %947 = vmatpush1.msra.mxu0 %v637
  %948 = vmatprep.subr.mxu0 %v634
  %949 = vmatpush1.msra.mxu0 %v633
  %950 = vmatprep.subr.mxu0 %v630
  %951 = vmatpush1.msra.mxu0 %v629
  %952 = vmatprep.subr.mxu0 %v626
  %953 = vmatpush1.msra.mxu0 %v625
  %954 = vmatprep.subr.mxu0 %v622
  %955 = vmatpush1.msra.mxu0 %v621
  %956 = vmatprep.subr.mxu0 0.0
  %957 = vmatpush2.msra.mxu0 0.0
  %958 = vmatprep.subr.mxu0 0.0
  %959 = vmatpush2.msra.mxu0 0.0
  %960 = vmatprep.subr.mxu0 0.0
  %961 = vmatpush2.msra.mxu0 0.0
  %962 = vmatprep.subr.mxu0 0.0
  %963 = vmatpush2.msra.mxu0 0.0
  %964 = vmatprep.subr.mxu0 0.0
  %965 = vmatpush2.msra.mxu0 0.0
  %966 = vmatprep.subr.mxu0 0.0
  %967 = vmatpush2.msra.mxu0 0.0
  %968 = vmatprep.subr.mxu0 0.0
  %969 = vmatpush2.msra.mxu0 0.0
  %970 = vmatprep.subr.mxu0 0.0
  %971 = vmatpush2.msra.mxu0 0.0
  %972 = vmatprep.subr.mxu0 0.0
  %973 = vmatpush2.msra.mxu0 0.0
  %974 = vmatprep.subr.mxu0 0.0
  %975 = vmatpush2.msra.mxu0 0.0
  %976 = vmatprep.subr.mxu0 0.0
  %977 = vmatpush2.msra.mxu0 0.0
  %978 = vmatprep.subr.mxu0 0.0
  %979 = vmatpush2.msra.mxu0 0.0
  %980 = vmatprep.subr.mxu0 0.0
  %981 = vmatpush2.msra.mxu0 0.0
  %982 = vmatprep.subr.mxu0 0.0
  %983 = vmatpush2.msra.mxu0 0.0
  %984 = vmatprep.subr.mxu0 0.0
  %985 = vmatpush2.msra.mxu0 0.0
  %986 = vmatprep.subr.mxu0 0.0
  %987 = vmatpush2.msra.mxu0 0.0
  %988 = vmatprep.mubr.f32.mxu0 0.0
  %989 = vmatmul.mubr.f32.gmra.mxu0 %v852
  %v990 = vpop.f32.mrf.mxu0
  %v991 = vadd.f32 0.0, %v990
  %v992 = vpop.f32.mrf.mxu0
  %v993 = vadd.f32 0.0, %v992
  %994 = vdwg.mxu0
  %v995 = vadd.f32 %v269, %v920
  %v996 = vadd.f32 %v271, %v922
  %v997 = vadd.f32 %v382, %v991
  %v998 = vadd.f32 %v384, %v993
  %v999 = vxor.u32 %v995, 2147483648
  %v1000 = vxor.u32 %v996, 2147483648
  %v1001 = vxor.u32 %v997, 2147483648
  %v1002 = vmul.f32 %v999, 1.442695
  %v1003 = vpow.pop %v1002
  %v1004 = vmul.f32 %v1000, 1.442695
  %v1005 = vpow.pop %v1004
  %v1006 = vmul.f32 %v1001, 1.442695
  %v1007 = vpow.pop %v1006
  %v1008 = vadd.f32 %v1003, 1.0
  %v1009 = vadd.f32 %v1005, 1.0
  %v1010 = vadd.f32 %v1007, 1.0
  %v1011 = vrcp.pop %v1008
  %v1012 = vmul.f32 1.0, %v1011
  %v1013 = vrcp.pop %v1009
  %v1014 = vmul.f32 1.0, %v1013
  %v1015 = vrcp.pop %v1010
  %v1016 = vmul.f32 1.0, %v1015
  %v1017 = vtanh.pop %v998
  %v1018 = vmul.f32 %v1014, %v850
  %v1019 = vmul.f32 %v1012, %v1017
  %v1020 = vadd.f32 %v1018, %v1019
  %v1021 = vtanh.pop %v1020
  %v1022 = vmul.f32 %v1016, %v1021
  %1023 = vmatprep.subr.mxu0 %v680
  %1024 = vmatpush1.msra.mxu0 %v679
  %1025 = vmatprep.subr.mxu0 %v676
  %1026 = vmatpush1.msra.mxu0 %v675
  %1027 = vmatprep.subr.mxu0 %v672
  %1028 = vmatpush1.msra.mxu0 %v671
  %1029 = vmatprep.subr.mxu0 %v668
  %1030 = vmatpush1.msra.mxu0 %v667
  %1031 = vmatprep.subr.mxu0 %v664
  %1032 = vmatpush1.msra.mxu0 %v663
  %1033 = vmatprep.subr.mxu0 %v660
  %1034 = vmatpush1.msra.mxu0 %v659
  %1035 = vmatprep.subr.mxu0 %v656
  %1036 = vmatpush1.msra.mxu0 %v655
  %1037 = vmatprep.subr.mxu0 %v652
  %1038 = vmatpush1.msra.mxu0 %v651
  %1039 = vmatprep.subr.mxu0 %v648
  %1040 = vmatpush1.msra.mxu0 %v647
  %1041 = vmatprep.subr.mxu0 %v644
  %1042 = vmatpush1.msra.mxu0 %v643
  %1043 = vmatprep.subr.mxu0 %v640
  %1044 = vmatpush1.msra.mxu0 %v639
  %1045 = vmatprep.subr.mxu0 %v636
  %1046 = vmatpush1.msra.mxu0 %v635
  %1047 = vmatprep.subr.mxu0 %v632
  %1048 = vmatpush1.msra.mxu0 %v631
  %1049 = vmatprep.subr.mxu0 %v628
  %1050 = vmatpush1.msra.mxu0 %v627
  %1051 = vmatprep.subr.mxu0 %v624
  %1052 = vmatpush1.msra.mxu0 %v623
  %1053 = vmatprep.subr.mxu0 %v620
  %1054 = vmatpush1.msra.mxu0 %v619
  %1055 = vmatprep.subr.mxu0 0.0
  %1056 = vmatpush2.msra.mxu0 0.0
  %1057 = vmatprep.subr.mxu0 0.0
  %1058 = vmatpush2.msra.mxu0 0.0
  %1059 = vmatprep.subr.mxu0 0.0
  %1060 = vmatpush2.msra.mxu0 0.0
  %1061 = vmatprep.subr.mxu0 0.0
  %1062 = vmatpush2.msra.mxu0 0.0
  %1063 = vmatprep.subr.mxu0 0.0
  %1064 = vmatpush2.msra.mxu0 0.0
  %1065 = vmatprep.subr.mxu0 0.0
  %1066 = vmatpush2.msra.mxu0 0.0
  %1067 = vmatprep.subr.mxu0 0.0
  %1068 = vmatpush2.msra.mxu0 0.0
  %1069 = vmatprep.subr.mxu0 0.0
  %1070 = vmatpush2.msra.mxu0 0.0
  %1071 = vmatprep.subr.mxu0 0.0
  %1072 = vmatpush2.msra.mxu0 0.0
  %1073 = vmatprep.subr.mxu0 0.0
  %1074 = vmatpush2.msra.mxu0 0.0
  %1075 = vmatprep.subr.mxu0 0.0
  %1076 = vmatpush2.msra.mxu0 0.0
  %1077 = vmatprep.subr.mxu0 0.0
  %1078 = vmatpush2.msra.mxu0 0.0
  %1079 = vmatprep.subr.mxu0 0.0
  %1080 = vmatpush2.msra.mxu0 0.0
  %1081 = vmatprep.subr.mxu0 0.0
  %1082 = vmatpush2.msra.mxu0 0.0
  %1083 = vmatprep.subr.mxu0 0.0
  %1084 = vmatpush2.msra.mxu0 0.0
  %1085 = vmatprep.subr.mxu0 0.0
  %1086 = vmatpush2.msra.mxu0 0.0
  %1087 = vmatprep.mubr.f32.mxu0 0.0
  %1088 = vmatmul.mubr.f32.gmra.mxu0 %v1022
  %v1089 = vpop.f32.mrf.mxu0
  %v1090 = vadd.f32 0.0, %v1089
  %v1091 = vpop.f32.mrf.mxu0
  %v1092 = vadd.f32 0.0, %v1091
  %1093 = vdwg.mxu0
  %1094 = vmatprep.subr.mxu0 %v682
  %1095 = vmatpush1.msra.mxu0 %v681
  %1096 = vmatprep.subr.mxu0 %v678
  %1097 = vmatpush1.msra.mxu0 %v677
  %1098 = vmatprep.subr.mxu0 %v674
  %1099 = vmatpush1.msra.mxu0 %v673
  %1100 = vmatprep.subr.mxu0 %v670
  %1101 = vmatpush1.msra.mxu0 %v669
  %1102 = vmatprep.subr.mxu0 %v666
  %1103 = vmatpush1.msra.mxu0 %v665
  %1104 = vmatprep.subr.mxu0 %v662
  %1105 = vmatpush1.msra.mxu0 %v661
  %1106 = vmatprep.subr.mxu0 %v658
  %1107 = vmatpush1.msra.mxu0 %v657
  %1108 = vmatprep.subr.mxu0 %v654
  %1109 = vmatpush1.msra.mxu0 %v653
  %1110 = vmatprep.subr.mxu0 %v650
  %1111 = vmatpush1.msra.mxu0 %v649
  %1112 = vmatprep.subr.mxu0 %v646
  %1113 = vmatpush1.msra.mxu0 %v645
  %1114 = vmatprep.subr.mxu0 %v642
  %1115 = vmatpush1.msra.mxu0 %v641
  %1116 = vmatprep.subr.mxu0 %v638
  %1117 = vmatpush1.msra.mxu0 %v637
  %1118 = vmatprep.subr.mxu0 %v634
  %1119 = vmatpush1.msra.mxu0 %v633
  %1120 = vmatprep.subr.mxu0 %v630
  %1121 = vmatpush1.msra.mxu0 %v629
  %1122 = vmatprep.subr.mxu0 %v626
  %1123 = vmatpush1.msra.mxu0 %v625
  %1124 = vmatprep.subr.mxu0 %v622
  %1125 = vmatpush1.msra.mxu0 %v621
  %1126 = vmatprep.subr.mxu0 0.0
  %1127 = vmatpush2.msra.mxu0 0.0
  %1128 = vmatprep.subr.mxu0 0.0
  %1129 = vmatpush2.msra.mxu0 0.0
  %1130 = vmatprep.subr.mxu0 0.0
  %1131 = vmatpush2.msra.mxu0 0.0
  %1132 = vmatprep.subr.mxu0 0.0
  %1133 = vmatpush2.msra.mxu0 0.0
  %1134 = vmatprep.subr.mxu0 0.0
  %1135 = vmatpush2.msra.mxu0 0.0
  %1136 = vmatprep.subr.mxu0 0.0
  %1137 = vmatpush2.msra.mxu0 0.0
  %1138 = vmatprep.subr.mxu0 0.0
  %1139 = vmatpush2.msra.mxu0 0.0
  %1140 = vmatprep.subr.mxu0 0.0
  %1141 = vmatpush2.msra.mxu0 0.0
  %1142 = vmatprep.subr.mxu0 0.0
  %1143 = vmatpush2.msra.mxu0 0.0
  %1144 = vmatprep.subr.mxu0 0.0
  %1145 = vmatpush2.msra.mxu0 0.0
  %1146 = vmatprep.subr.mxu0 0.0
  %1147 = vmatpush2.msra.mxu0 0.0
  %1148 = vmatprep.subr.mxu0 0.0
  %1149 = vmatpush2.msra.mxu0 0.0
  %1150 = vmatprep.subr.mxu0 0.0
  %1151 = vmatpush2.msra.mxu0 0.0
  %1152 = vmatprep.subr.mxu0 0.0
  %1153 = vmatpush2.msra.mxu0 0.0
  %1154 = vmatprep.subr.mxu0 0.0
  %1155 = vmatpush2.msra.mxu0 0.0
  %1156 = vmatprep.subr.mxu0 0.0
  %1157 = vmatpush2.msra.mxu0 0.0
  %1158 = vmatprep.mubr.f32.mxu0 0.0
  %1159 = vmatmul.mubr.f32.gmra.mxu0 %v1022
  %v1160 = vpop.f32.mrf.mxu0
  %v1161 = vadd.f32 0.0, %v1160
  %v1162 = vpop.f32.mrf.mxu0
  %v1163 = vadd.f32 0.0, %v1162
  %1164 = vdwg.mxu0
  %v1165 = vadd.f32 %v275, %v1090
  %v1166 = vadd.f32 %v277, %v1092
  %v1167 = vadd.f32 %v388, %v1161
  %v1168 = vadd.f32 %v390, %v1163
  %v1169 = vxor.u32 %v1165, 2147483648
  %v1170 = vxor.u32 %v1166, 2147483648
  %v1171 = vxor.u32 %v1167, 2147483648
  %v1172 = vmul.f32 %v1169, 1.442695
  %v1173 = vpow.pop %v1172
  %v1174 = vmul.f32 %v1170, 1.442695
  %v1175 = vpow.pop %v1174
  %v1176 = vmul.f32 %v1171, 1.442695
  %v1177 = vpow.pop %v1176
  %v1178 = vadd.f32 %v1173, 1.0
  %v1179 = vadd.f32 %v1175, 1.0
  %v1180 = vadd.f32 %v1177, 1.0
  %v1181 = vrcp.pop %v1178
  %v1182 = vmul.f32 1.0, %v1181
  %v1183 = vrcp.pop %v1179
  %v1184 = vmul.f32 1.0, %v1183
  %v1185 = vrcp.pop %v1180
  %v1186 = vmul.f32 1.0, %v1185
  %v1187 = vtanh.pop %v1168
  %v1188 = vmul.f32 %v1184, %v1020
  %v1189 = vmul.f32 %v1182, %v1187
  %v1190 = vadd.f32 %v1188, %v1189
  %v1191 = vtanh.pop %v1190
  %v1192 = vmul.f32 %v1186, %v1191
  %1193 = vmatprep.subr.mxu0 %v680
  %1194 = vmatpush1.msra.mxu0 %v679
  %1195 = vmatprep.subr.mxu0 %v676
  %1196 = vmatpush1.msra.mxu0 %v675
  %1197 = vmatprep.subr.mxu0 %v672
  %1198 = vmatpush1.msra.mxu0 %v671
  %1199 = vmatprep.subr.mxu0 %v668
  %1200 = vmatpush1.msra.mxu0 %v667
  %1201 = vmatprep.subr.mxu0 %v664
  %1202 = vmatpush1.msra.mxu0 %v663
  %1203 = vmatprep.subr.mxu0 %v660
  %1204 = vmatpush1.msra.mxu0 %v659
  %1205 = vmatprep.subr.mxu0 %v656
  %1206 = vmatpush1.msra.mxu0 %v655
  %1207 = vmatprep.subr.mxu0 %v652
  %1208 = vmatpush1.msra.mxu0 %v651
  %1209 = vmatprep.subr.mxu0 %v648
  %1210 = vmatpush1.msra.mxu0 %v647
  %1211 = vmatprep.subr.mxu0 %v644
  %1212 = vmatpush1.msra.mxu0 %v643
  %1213 = vmatprep.subr.mxu0 %v640
  %1214 = vmatpush1.msra.mxu0 %v639
  %1215 = vmatprep.subr.mxu0 %v636
  %1216 = vmatpush1.msra.mxu0 %v635
  %1217 = vmatprep.subr.mxu0 %v632
  %1218 = vmatpush1.msra.mxu0 %v631
  %1219 = vmatprep.subr.mxu0 %v628
  %1220 = vmatpush1.msra.mxu0 %v627
  %1221 = vmatprep.subr.mxu0 %v624
  %1222 = vmatpush1.msra.mxu0 %v623
  %1223 = vmatprep.subr.mxu0 %v620
  %1224 = vmatpush1.msra.mxu0 %v619
  %1225 = vmatprep.subr.mxu0 0.0
  %1226 = vmatpush2.msra.mxu0 0.0
  %1227 = vmatprep.subr.mxu0 0.0
  %1228 = vmatpush2.msra.mxu0 0.0
  %1229 = vmatprep.subr.mxu0 0.0
  %1230 = vmatpush2.msra.mxu0 0.0
  %1231 = vmatprep.subr.mxu0 0.0
  %1232 = vmatpush2.msra.mxu0 0.0
  %1233 = vmatprep.subr.mxu0 0.0
  %1234 = vmatpush2.msra.mxu0 0.0
  %1235 = vmatprep.subr.mxu0 0.0
  %1236 = vmatpush2.msra.mxu0 0.0
  %1237 = vmatprep.subr.mxu0 0.0
  %1238 = vmatpush2.msra.mxu0 0.0
  %1239 = vmatprep.subr.mxu0 0.0
  %1240 = vmatpush2.msra.mxu0 0.0
  %1241 = vmatprep.subr.mxu0 0.0
  %1242 = vmatpush2.msra.mxu0 0.0
  %1243 = vmatprep.subr.mxu0 0.0
  %1244 = vmatpush2.msra.mxu0 0.0
  %1245 = vmatprep.subr.mxu0 0.0
  %1246 = vmatpush2.msra.mxu0 0.0
  %1247 = vmatprep.subr.mxu0 0.0
  %1248 = vmatpush2.msra.mxu0 0.0
  %1249 = vmatprep.subr.mxu0 0.0
  %1250 = vmatpush2.msra.mxu0 0.0
  %1251 = vmatprep.subr.mxu0 0.0
  %1252 = vmatpush2.msra.mxu0 0.0
  %1253 = vmatprep.subr.mxu0 0.0
  %1254 = vmatpush2.msra.mxu0 0.0
  %1255 = vmatprep.subr.mxu0 0.0
  %1256 = vmatpush2.msra.mxu0 0.0
  %1257 = vmatprep.mubr.f32.mxu0 0.0
  %1258 = vmatmul.mubr.f32.gmra.mxu0 %v1192
  %v1259 = vpop.f32.mrf.mxu0
  %v1260 = vadd.f32 0.0, %v1259
  %v1261 = vpop.f32.mrf.mxu0
  %v1262 = vadd.f32 0.0, %v1261
  %1263 = vdwg.mxu0
  %1264 = vmatprep.subr.mxu0 %v682
  %1265 = vmatpush1.msra.mxu0 %v681
  %1266 = vmatprep.subr.mxu0 %v678
  %1267 = vmatpush1.msra.mxu0 %v677
  %1268 = vmatprep.subr.mxu0 %v674
  %1269 = vmatpush1.msra.mxu0 %v673
  %1270 = vmatprep.subr.mxu0 %v670
  %1271 = vmatpush1.msra.mxu0 %v669
  %1272 = vmatprep.subr.mxu0 %v666
  %1273 = vmatpush1.msra.mxu0 %v665
  %1274 = vmatprep.subr.mxu0 %v662
  %1275 = vmatpush1.msra.mxu0 %v661
  %1276 = vmatprep.subr.mxu0 %v658
  %1277 = vmatpush1.msra.mxu0 %v657
  %1278 = vmatprep.subr.mxu0 %v654
  %1279 = vmatpush1.msra.mxu0 %v653
  %1280 = vmatprep.subr.mxu0 %v650
  %1281 = vmatpush1.msra.mxu0 %v649
  %1282 = vmatprep.subr.mxu0 %v646
  %1283 = vmatpush1.msra.mxu0 %v645
  %1284 = vmatprep.subr.mxu0 %v642
  %1285 = vmatpush1.msra.mxu0 %v641
  %1286 = vmatprep.subr.mxu0 %v638
  %1287 = vmatpush1.msra.mxu0 %v637
  %1288 = vmatprep.subr.mxu0 %v634
  %1289 = vmatpush1.msra.mxu0 %v633
  %1290 = vmatprep.subr.mxu0 %v630
  %1291 = vmatpush1.msra.mxu0 %v629
  %1292 = vmatprep.subr.mxu0 %v626
  %1293 = vmatpush1.msra.mxu0 %v625
  %1294 = vmatprep.subr.mxu0 %v622
  %1295 = vmatpush1.msra.mxu0 %v621
  %1296 = vmatprep.subr.mxu0 0.0
  %1297 = vmatpush2.msra.mxu0 0.0
  %1298 = vmatprep.subr.mxu0 0.0
  %1299 = vmatpush2.msra.mxu0 0.0
  %1300 = vmatprep.subr.mxu0 0.0
  %1301 = vmatpush2.msra.mxu0 0.0
  %1302 = vmatprep.subr.mxu0 0.0
  %1303 = vmatpush2.msra.mxu0 0.0
  %1304 = vmatprep.subr.mxu0 0.0
  %1305 = vmatpush2.msra.mxu0 0.0
  %1306 = vmatprep.subr.mxu0 0.0
  %1307 = vmatpush2.msra.mxu0 0.0
  %1308 = vmatprep.subr.mxu0 0.0
  %1309 = vmatpush2.msra.mxu0 0.0
  %1310 = vmatprep.subr.mxu0 0.0
  %1311 = vmatpush2.msra.mxu0 0.0
  %1312 = vmatprep.subr.mxu0 0.0
  %1313 = vmatpush2.msra.mxu0 0.0
  %1314 = vmatprep.subr.mxu0 0.0
  %1315 = vmatpush2.msra.mxu0 0.0
  %1316 = vmatprep.subr.mxu0 0.0
  %1317 = vmatpush2.msra.mxu0 0.0
  %1318 = vmatprep.subr.mxu0 0.0
  %1319 = vmatpush2.msra.mxu0 0.0
  %1320 = vmatprep.subr.mxu0 0.0
  %1321 = vmatpush2.msra.mxu0 0.0
  %1322 = vmatprep.subr.mxu0 0.0
  %1323 = vmatpush2.msra.mxu0 0.0
  %1324 = vmatprep.subr.mxu0 0.0
  %1325 = vmatpush2.msra.mxu0 0.0
  %1326 = vmatprep.subr.mxu0 0.0
  %1327 = vmatpush2.msra.mxu0 0.0
  %1328 = vmatprep.mubr.f32.mxu0 0.0
  %1329 = vmatmul.mubr.f32.gmra.mxu0 %v1192
  %v1330 = vpop.f32.mrf.mxu0
  %v1331 = vadd.f32 0.0, %v1330
  %v1332 = vpop.f32.mrf.mxu0
  %v1333 = vadd.f32 0.0, %v1332
  %1334 = vdwg.mxu0
  %v1335 = vadd.f32 %v281, %v1260
  %v1336 = vadd.f32 %v283, %v1262
  %v1337 = vadd.f32 %v394, %v1331
  %v1338 = vadd.f32 %v396, %v1333
  %v1339 = vxor.u32 %v1335, 2147483648
  %v1340 = vxor.u32 %v1336, 2147483648
  %v1341 = vxor.u32 %v1337, 2147483648
  %v1342 = vmul.f32 %v1339, 1.442695
  %v1343 = vpow.pop %v1342
  %v1344 = vmul.f32 %v1340, 1.442695
  %v1345 = vpow.pop %v1344
  %v1346 = vmul.f32 %v1341, 1.442695
  %v1347 = vpow.pop %v1346
  %v1348 = vadd.f32 %v1343, 1.0
  %v1349 = vadd.f32 %v1345, 1.0
  %v1350 = vadd.f32 %v1347, 1.0
  %v1351 = vrcp.pop %v1348
  %v1352 = vmul.f32 1.0, %v1351
  %v1353 = vrcp.pop %v1349
  %v1354 = vmul.f32 1.0, %v1353
  %v1355 = vrcp.pop %v1350
  %v1356 = vmul.f32 1.0, %v1355
  %v1357 = vtanh.pop %v1338
  %v1358 = vmul.f32 %v1354, %v1190
  %v1359 = vmul.f32 %v1352, %v1357
  %v1360 = vadd.f32 %v1358, %v1359
  %v1361 = vtanh.pop %v1360
  %v1362 = vmul.f32 %v1356, %v1361
  %1363 = vmatprep.subr.mxu0 %v680
  %1364 = vmatpush1.msra.mxu0 %v679
  %1365 = vmatprep.subr.mxu0 %v676
  %1366 = vmatpush1.msra.mxu0 %v675
  %1367 = vmatprep.subr.mxu0 %v672
  %1368 = vmatpush1.msra.mxu0 %v671
  %1369 = vmatprep.subr.mxu0 %v668
  %1370 = vmatpush1.msra.mxu0 %v667
  %1371 = vmatprep.subr.mxu0 %v664
  %1372 = vmatpush1.msra.mxu0 %v663
  %1373 = vmatprep.subr.mxu0 %v660
  %1374 = vmatpush1.msra.mxu0 %v659
  %1375 = vmatprep.subr.mxu0 %v656
  %1376 = vmatpush1.msra.mxu0 %v655
  %1377 = vmatprep.subr.mxu0 %v652
  %1378 = vmatpush1.msra.mxu0 %v651
  %1379 = vmatprep.subr.mxu0 %v648
  %1380 = vmatpush1.msra.mxu0 %v647
  %1381 = vmatprep.subr.mxu0 %v644
  %1382 = vmatpush1.msra.mxu0 %v643
  %1383 = vmatprep.subr.mxu0 %v640
  %1384 = vmatpush1.msra.mxu0 %v639
  %1385 = vmatprep.subr.mxu0 %v636
  %1386 = vmatpush1.msra.mxu0 %v635
  %1387 = vmatprep.subr.mxu0 %v632
  %1388 = vmatpush1.msra.mxu0 %v631
  %1389 = vmatprep.subr.mxu0 %v628
  %1390 = vmatpush1.msra.mxu0 %v627
  %1391 = vmatprep.subr.mxu0 %v624
  %1392 = vmatpush1.msra.mxu0 %v623
  %1393 = vmatprep.subr.mxu0 %v620
  %1394 = vmatpush1.msra.mxu0 %v619
  %1395 = vmatprep.subr.mxu0 0.0
  %1396 = vmatpush2.msra.mxu0 0.0
  %1397 = vmatprep.subr.mxu0 0.0
  %1398 = vmatpush2.msra.mxu0 0.0
  %1399 = vmatprep.subr.mxu0 0.0
  %1400 = vmatpush2.msra.mxu0 0.0
  %1401 = vmatprep.subr.mxu0 0.0
  %1402 = vmatpush2.msra.mxu0 0.0
  %1403 = vmatprep.subr.mxu0 0.0
  %1404 = vmatpush2.msra.mxu0 0.0
  %1405 = vmatprep.subr.mxu0 0.0
  %1406 = vmatpush2.msra.mxu0 0.0
  %1407 = vmatprep.subr.mxu0 0.0
  %1408 = vmatpush2.msra.mxu0 0.0
  %1409 = vmatprep.subr.mxu0 0.0
  %1410 = vmatpush2.msra.mxu0 0.0
  %1411 = vmatprep.subr.mxu0 0.0
  %1412 = vmatpush2.msra.mxu0 0.0
  %1413 = vmatprep.subr.mxu0 0.0
  %1414 = vmatpush2.msra.mxu0 0.0
  %1415 = vmatprep.subr.mxu0 0.0
  %1416 = vmatpush2.msra.mxu0 0.0
  %1417 = vmatprep.subr.mxu0 0.0
  %1418 = vmatpush2.msra.mxu0 0.0
  %1419 = vmatprep.subr.mxu0 0.0
  %1420 = vmatpush2.msra.mxu0 0.0
  %1421 = vmatprep.subr.mxu0 0.0
  %1422 = vmatpush2.msra.mxu0 0.0
  %1423 = vmatprep.subr.mxu0 0.0
  %1424 = vmatpush2.msra.mxu0 0.0
  %1425 = vmatprep.subr.mxu0 0.0
  %1426 = vmatpush2.msra.mxu0 0.0
  %1427 = vmatprep.mubr.f32.mxu0 0.0
  %1428 = vmatmul.mubr.f32.gmra.mxu0 %v1362
  %v1429 = vpop.f32.mrf.mxu0
  %v1430 = vadd.f32 0.0, %v1429
  %v1431 = vpop.f32.mrf.mxu0
  %v1432 = vadd.f32 0.0, %v1431
  %1433 = vdwg.mxu0
  %1434 = vmatprep.subr.mxu0 %v682
  %1435 = vmatpush1.msra.mxu0 %v681
  %1436 = vmatprep.subr.mxu0 %v678
  %1437 = vmatpush1.msra.mxu0 %v677
  %1438 = vmatprep.subr.mxu0 %v674
  %1439 = vmatpush1.msra.mxu0 %v673
  %1440 = vmatprep.subr.mxu0 %v670
  %1441 = vmatpush1.msra.mxu0 %v669
  %1442 = vmatprep.subr.mxu0 %v666
  %1443 = vmatpush1.msra.mxu0 %v665
  %1444 = vmatprep.subr.mxu0 %v662
  %1445 = vmatpush1.msra.mxu0 %v661
  %1446 = vmatprep.subr.mxu0 %v658
  %1447 = vmatpush1.msra.mxu0 %v657
  %1448 = vmatprep.subr.mxu0 %v654
  %1449 = vmatpush1.msra.mxu0 %v653
  %1450 = vmatprep.subr.mxu0 %v650
  %1451 = vmatpush1.msra.mxu0 %v649
  %1452 = vmatprep.subr.mxu0 %v646
  %1453 = vmatpush1.msra.mxu0 %v645
  %1454 = vmatprep.subr.mxu0 %v642
  %1455 = vmatpush1.msra.mxu0 %v641
  %1456 = vmatprep.subr.mxu0 %v638
  %1457 = vmatpush1.msra.mxu0 %v637
  %1458 = vmatprep.subr.mxu0 %v634
  %1459 = vmatpush1.msra.mxu0 %v633
  %1460 = vmatprep.subr.mxu0 %v630
  %1461 = vmatpush1.msra.mxu0 %v629
  %1462 = vmatprep.subr.mxu0 %v626
  %1463 = vmatpush1.msra.mxu0 %v625
  %1464 = vmatprep.subr.mxu0 %v622
  %1465 = vmatpush1.msra.mxu0 %v621
  %1466 = vmatprep.subr.mxu0 0.0
  %1467 = vmatpush2.msra.mxu0 0.0
  %1468 = vmatprep.subr.mxu0 0.0
  %1469 = vmatpush2.msra.mxu0 0.0
  %1470 = vmatprep.subr.mxu0 0.0
  %1471 = vmatpush2.msra.mxu0 0.0
  %1472 = vmatprep.subr.mxu0 0.0
  %1473 = vmatpush2.msra.mxu0 0.0
  %1474 = vmatprep.subr.mxu0 0.0
  %1475 = vmatpush2.msra.mxu0 0.0
  %1476 = vmatprep.subr.mxu0 0.0
  %1477 = vmatpush2.msra.mxu0 0.0
  %1478 = vmatprep.subr.mxu0 0.0
  %1479 = vmatpush2.msra.mxu0 0.0
  %1480 = vmatprep.subr.mxu0 0.0
  %1481 = vmatpush2.msra.mxu0 0.0
  %1482 = vmatprep.subr.mxu0 0.0
  %1483 = vmatpush2.msra.mxu0 0.0
  %1484 = vmatprep.subr.mxu0 0.0
  %1485 = vmatpush2.msra.mxu0 0.0
  %1486 = vmatprep.subr.mxu0 0.0
  %1487 = vmatpush2.msra.mxu0 0.0
  %1488 = vmatprep.subr.mxu0 0.0
  %1489 = vmatpush2.msra.mxu0 0.0
  %1490 = vmatprep.subr.mxu0 0.0
  %1491 = vmatpush2.msra.mxu0 0.0
  %1492 = vmatprep.subr.mxu0 0.0
  %1493 = vmatpush2.msra.mxu0 0.0
  %1494 = vmatprep.subr.mxu0 0.0
  %1495 = vmatpush2.msra.mxu0 0.0
  %1496 = vmatprep.subr.mxu0 0.0
  %1497 = vmatpush2.msra.mxu0 0.0
  %1498 = vmatprep.mubr.f32.mxu0 0.0
  %1499 = vmatmul.mubr.f32.gmra.mxu0 %v1362
  %v1500 = vpop.f32.mrf.mxu0
  %v1501 = vadd.f32 0.0, %v1500
  %v1502 = vpop.f32.mrf.mxu0
  %v1503 = vadd.f32 0.0, %v1502
  %1504 = vdwg.mxu0
  %v1505 = vadd.f32 %v287, %v1430
  %v1506 = vadd.f32 %v289, %v1432
  %v1507 = vadd.f32 %v400, %v1501
  %v1508 = vadd.f32 %v402, %v1503
  %v1509 = vxor.u32 %v1505, 2147483648
  %v1510 = vxor.u32 %v1506, 2147483648
  %v1511 = vxor.u32 %v1507, 2147483648
  %v1512 = vmul.f32 %v1509, 1.442695
  %v1513 = vpow.pop %v1512
  %v1514 = vmul.f32 %v1510, 1.442695
  %v1515 = vpow.pop %v1514
  %v1516 = vmul.f32 %v1511, 1.442695
  %v1517 = vpow.pop %v1516
  %v1518 = vadd.f32 %v1513, 1.0
  %v1519 = vadd.f32 %v1515, 1.0
  %v1520 = vadd.f32 %v1517, 1.0
  %v1521 = vrcp.pop %v1518
  %v1522 = vmul.f32 1.0, %v1521
  %v1523 = vrcp.pop %v1519
  %v1524 = vmul.f32 1.0, %v1523
  %v1525 = vrcp.pop %v1520
  %v1526 = vmul.f32 1.0, %v1525
  %v1527 = vtanh.pop %v1508
  %v1528 = vmul.f32 %v1524, %v1360
  %v1529 = vmul.f32 %v1522, %v1527
  %v1530 = vadd.f32 %v1528, %v1529
  %v1531 = vtanh.pop %v1530
  %v1532 = vmul.f32 %v1526, %v1531
  %1533 = vmatprep.subr.mxu0 %v680
  %1534 = vmatpush1.msra.mxu0 %v679
  %1535 = vmatprep.subr.mxu0 %v676
  %1536 = vmatpush1.msra.mxu0 %v675
  %1537 = vmatprep.subr.mxu0 %v672
  %1538 = vmatpush1.msra.mxu0 %v671
  %1539 = vmatprep.subr.mxu0 %v668
  %1540 = vmatpush1.msra.mxu0 %v667
  %1541 = vmatprep.subr.mxu0 %v664
  %1542 = vmatpush1.msra.mxu0 %v663
  %1543 = vmatprep.subr.mxu0 %v660
  %1544 = vmatpush1.msra.mxu0 %v659
  %1545 = vmatprep.subr.mxu0 %v656
  %1546 = vmatpush1.msra.mxu0 %v655
  %1547 = vmatprep.subr.mxu0 %v652
  %1548 = vmatpush1.msra.mxu0 %v651
  %1549 = vmatprep.subr.mxu0 %v648
  %1550 = vmatpush1.msra.mxu0 %v647
  %1551 = vmatprep.subr.mxu0 %v644
  %1552 = vmatpush1.msra.mxu0 %v643
  %1553 = vmatprep.subr.mxu0 %v640
  %1554 = vmatpush1.msra.mxu0 %v639
  %1555 = vmatprep.subr.mxu0 %v636
  %1556 = vmatpush1.msra.mxu0 %v635
  %1557 = vmatprep.subr.mxu0 %v632
  %1558 = vmatpush1.msra.mxu0 %v631
  %1559 = vmatprep.subr.mxu0 %v628
  %1560 = vmatpush1.msra.mxu0 %v627
  %1561 = vmatprep.subr.mxu0 %v624
  %1562 = vmatpush1.msra.mxu0 %v623
  %1563 = vmatprep.subr.mxu0 %v620
  %1564 = vmatpush1.msra.mxu0 %v619
  %1565 = vmatprep.subr.mxu0 0.0
  %1566 = vmatpush2.msra.mxu0 0.0
  %1567 = vmatprep.subr.mxu0 0.0
  %1568 = vmatpush2.msra.mxu0 0.0
  %1569 = vmatprep.subr.mxu0 0.0
  %1570 = vmatpush2.msra.mxu0 0.0
  %1571 = vmatprep.subr.mxu0 0.0
  %1572 = vmatpush2.msra.mxu0 0.0
  %1573 = vmatprep.subr.mxu0 0.0
  %1574 = vmatpush2.msra.mxu0 0.0
  %1575 = vmatprep.subr.mxu0 0.0
  %1576 = vmatpush2.msra.mxu0 0.0
  %1577 = vmatprep.subr.mxu0 0.0
  %1578 = vmatpush2.msra.mxu0 0.0
  %1579 = vmatprep.subr.mxu0 0.0
  %1580 = vmatpush2.msra.mxu0 0.0
  %1581 = vmatprep.subr.mxu0 0.0
  %1582 = vmatpush2.msra.mxu0 0.0
  %1583 = vmatprep.subr.mxu0 0.0
  %1584 = vmatpush2.msra.mxu0 0.0
  %1585 = vmatprep.subr.mxu0 0.0
  %1586 = vmatpush2.msra.mxu0 0.0
  %1587 = vmatprep.subr.mxu0 0.0
  %1588 = vmatpush2.msra.mxu0 0.0
  %1589 = vmatprep.subr.mxu0 0.0
  %1590 = vmatpush2.msra.mxu0 0.0
  %1591 = vmatprep.subr.mxu0 0.0
  %1592 = vmatpush2.msra.mxu0 0.0
  %1593 = vmatprep.subr.mxu0 0.0
  %1594 = vmatpush2.msra.mxu0 0.0
  %1595 = vmatprep.subr.mxu0 0.0
  %1596 = vmatpush2.msra.mxu0 0.0
  %1597 = vmatprep.mubr.f32.mxu0 0.0
  %1598 = vmatmul.mubr.f32.gmra.mxu0 %v1532
  %v1599 = vpop.f32.mrf.mxu0
  %v1600 = vadd.f32 0.0, %v1599
  %v1601 = vpop.f32.mrf.mxu0
  %v1602 = vadd.f32 0.0, %v1601
  %1603 = vdwg.mxu0
  %1604 = vmatprep.subr.mxu0 %v682
  %1605 = vmatpush1.msra.mxu0 %v681
  %1606 = vmatprep.subr.mxu0 %v678
  %1607 = vmatpush1.msra.mxu0 %v677
  %1608 = vmatprep.subr.mxu0 %v674
  %1609 = vmatpush1.msra.mxu0 %v673
  %1610 = vmatprep.subr.mxu0 %v670
  %1611 = vmatpush1.msra.mxu0 %v669
  %1612 = vmatprep.subr.mxu0 %v666
  %1613 = vmatpush1.msra.mxu0 %v665
  %1614 = vmatprep.subr.mxu0 %v662
  %1615 = vmatpush1.msra.mxu0 %v661
  %1616 = vmatprep.subr.mxu0 %v658
  %1617 = vmatpush1.msra.mxu0 %v657
  %1618 = vmatprep.subr.mxu0 %v654
  %1619 = vmatpush1.msra.mxu0 %v653
  %1620 = vmatprep.subr.mxu0 %v650
  %1621 = vmatpush1.msra.mxu0 %v649
  %1622 = vmatprep.subr.mxu0 %v646
  %1623 = vmatpush1.msra.mxu0 %v645
  %1624 = vmatprep.subr.mxu0 %v642
  %1625 = vmatpush1.msra.mxu0 %v641
  %1626 = vmatprep.subr.mxu0 %v638
  %1627 = vmatpush1.msra.mxu0 %v637
  %1628 = vmatprep.subr.mxu0 %v634
  %1629 = vmatpush1.msra.mxu0 %v633
  %1630 = vmatprep.subr.mxu0 %v630
  %1631 = vmatpush1.msra.mxu0 %v629
  %1632 = vmatprep.subr.mxu0 %v626
  %1633 = vmatpush1.msra.mxu0 %v625
  %1634 = vmatprep.subr.mxu0 %v622
  %1635 = vmatpush1.msra.mxu0 %v621
  %1636 = vmatprep.subr.mxu0 0.0
  %1637 = vmatpush2.msra.mxu0 0.0
  %1638 = vmatprep.subr.mxu0 0.0
  %1639 = vmatpush2.msra.mxu0 0.0
  %1640 = vmatprep.subr.mxu0 0.0
  %1641 = vmatpush2.msra.mxu0 0.0
  %1642 = vmatprep.subr.mxu0 0.0
  %1643 = vmatpush2.msra.mxu0 0.0
  %1644 = vmatprep.subr.mxu0 0.0
  %1645 = vmatpush2.msra.mxu0 0.0
  %1646 = vmatprep.subr.mxu0 0.0
  %1647 = vmatpush2.msra.mxu0 0.0
  %1648 = vmatprep.subr.mxu0 0.0
  %1649 = vmatpush2.msra.mxu0 0.0
  %1650 = vmatprep.subr.mxu0 0.0
  %1651 = vmatpush2.msra.mxu0 0.0
  %1652 = vmatprep.subr.mxu0 0.0
  %1653 = vmatpush2.msra.mxu0 0.0
  %1654 = vmatprep.subr.mxu0 0.0
  %1655 = vmatpush2.msra.mxu0 0.0
  %1656 = vmatprep.subr.mxu0 0.0
  %1657 = vmatpush2.msra.mxu0 0.0
  %1658 = vmatprep.subr.mxu0 0.0
  %1659 = vmatpush2.msra.mxu0 0.0
  %1660 = vmatprep.subr.mxu0 0.0
  %1661 = vmatpush2.msra.mxu0 0.0
  %1662 = vmatprep.subr.mxu0 0.0
  %1663 = vmatpush2.msra.mxu0 0.0
  %1664 = vmatprep.subr.mxu0 0.0
  %1665 = vmatpush2.msra.mxu0 0.0
  %1666 = vmatprep.subr.mxu0 0.0
  %1667 = vmatpush2.msra.mxu0 0.0
  %1668 = vmatprep.mubr.f32.mxu0 0.0
  %1669 = vmatmul.mubr.f32.gmra.mxu0 %v1532
  %v1670 = vpop.f32.mrf.mxu0
  %v1671 = vadd.f32 0.0, %v1670
  %v1672 = vpop.f32.mrf.mxu0
  %v1673 = vadd.f32 0.0, %v1672
  %1674 = vdwg.mxu0
  %v1675 = vadd.f32 %v293, %v1600
  %v1676 = vadd.f32 %v295, %v1602
  %v1677 = vadd.f32 %v406, %v1671
  %v1678 = vadd.f32 %v408, %v1673
  %v1679 = vxor.u32 %v1675, 2147483648
  %v1680 = vxor.u32 %v1676, 2147483648
  %v1681 = vxor.u32 %v1677, 2147483648
  %v1682 = vmul.f32 %v1679, 1.442695
  %v1683 = vpow.pop %v1682
  %v1684 = vmul.f32 %v1680, 1.442695
  %v1685 = vpow.pop %v1684
  %v1686 = vmul.f32 %v1681, 1.442695
  %v1687 = vpow.pop %v1686
  %v1688 = vadd.f32 %v1683, 1.0
  %v1689 = vadd.f32 %v1685, 1.0
  %v1690 = vadd.f32 %v1687, 1.0
  %v1691 = vrcp.pop %v1688
  %v1692 = vmul.f32 1.0, %v1691
  %v1693 = vrcp.pop %v1689
  %v1694 = vmul.f32 1.0, %v1693
  %v1695 = vrcp.pop %v1690
  %v1696 = vmul.f32 1.0, %v1695
  %v1697 = vtanh.pop %v1678
  %v1698 = vmul.f32 %v1694, %v1530
  %v1699 = vmul.f32 %v1692, %v1697
  %v1700 = vadd.f32 %v1698, %v1699
  %v1701 = vtanh.pop %v1700
  %v1702 = vmul.f32 %v1696, %v1701
  %1703 = vmatprep.subr.mxu0 %v680
  %1704 = vmatpush1.msra.mxu0 %v679
  %1705 = vmatprep.subr.mxu0 %v676
  %1706 = vmatpush1.msra.mxu0 %v675
  %1707 = vmatprep.subr.mxu0 %v672
  %1708 = vmatpush1.msra.mxu0 %v671
  %1709 = vmatprep.subr.mxu0 %v668
  %1710 = vmatpush1.msra.mxu0 %v667
  %1711 = vmatprep.subr.mxu0 %v664
  %1712 = vmatpush1.msra.mxu0 %v663
  %1713 = vmatprep.subr.mxu0 %v660
  %1714 = vmatpush1.msra.mxu0 %v659
  %1715 = vmatprep.subr.mxu0 %v656
  %1716 = vmatpush1.msra.mxu0 %v655
  %1717 = vmatprep.subr.mxu0 %v652
  %1718 = vmatpush1.msra.mxu0 %v651
  %1719 = vmatprep.subr.mxu0 %v648
  %1720 = vmatpush1.msra.mxu0 %v647
  %1721 = vmatprep.subr.mxu0 %v644
  %1722 = vmatpush1.msra.mxu0 %v643
  %1723 = vmatprep.subr.mxu0 %v640
  %1724 = vmatpush1.msra.mxu0 %v639
  %1725 = vmatprep.subr.mxu0 %v636
  %1726 = vmatpush1.msra.mxu0 %v635
  %1727 = vmatprep.subr.mxu0 %v632
  %1728 = vmatpush1.msra.mxu0 %v631
  %1729 = vmatprep.subr.mxu0 %v628
  %1730 = vmatpush1.msra.mxu0 %v627
  %1731 = vmatprep.subr.mxu0 %v624
  %1732 = vmatpush1.msra.mxu0 %v623
  %1733 = vmatprep.subr.mxu0 %v620
  %1734 = vmatpush1.msra.mxu0 %v619
  %1735 = vmatprep.subr.mxu0 0.0
  %1736 = vmatpush2.msra.mxu0 0.0
  %1737 = vmatprep.subr.mxu0 0.0
  %1738 = vmatpush2.msra.mxu0 0.0
  %1739 = vmatprep.subr.mxu0 0.0
  %1740 = vmatpush2.msra.mxu0 0.0
  %1741 = vmatprep.subr.mxu0 0.0
  %1742 = vmatpush2.msra.mxu0 0.0
  %1743 = vmatprep.subr.mxu0 0.0
  %1744 = vmatpush2.msra.mxu0 0.0
  %1745 = vmatprep.subr.mxu0 0.0
  %1746 = vmatpush2.msra.mxu0 0.0
  %1747 = vmatprep.subr.mxu0 0.0
  %1748 = vmatpush2.msra.mxu0 0.0
  %1749 = vmatprep.subr.mxu0 0.0
  %1750 = vmatpush2.msra.mxu0 0.0
  %1751 = vmatprep.subr.mxu0 0.0
  %1752 = vmatpush2.msra.mxu0 0.0
  %1753 = vmatprep.subr.mxu0 0.0
  %1754 = vmatpush2.msra.mxu0 0.0
  %1755 = vmatprep.subr.mxu0 0.0
  %1756 = vmatpush2.msra.mxu0 0.0
  %1757 = vmatprep.subr.mxu0 0.0
  %1758 = vmatpush2.msra.mxu0 0.0
  %1759 = vmatprep.subr.mxu0 0.0
  %1760 = vmatpush2.msra.mxu0 0.0
  %1761 = vmatprep.subr.mxu0 0.0
  %1762 = vmatpush2.msra.mxu0 0.0
  %1763 = vmatprep.subr.mxu0 0.0
  %1764 = vmatpush2.msra.mxu0 0.0
  %1765 = vmatprep.subr.mxu0 0.0
  %1766 = vmatpush2.msra.mxu0 0.0
  %1767 = vmatprep.mubr.f32.mxu0 0.0
  %1768 = vmatmul.mubr.f32.gmra.mxu0 %v1702
  %v1769 = vpop.f32.mrf.mxu0
  %v1770 = vadd.f32 0.0, %v1769
  %v1771 = vpop.f32.mrf.mxu0
  %v1772 = vadd.f32 0.0, %v1771
  %1773 = vdwg.mxu0
  %1774 = vmatprep.subr.mxu0 %v682
  %1775 = vmatpush1.msra.mxu0 %v681
  %1776 = vmatprep.subr.mxu0 %v678
  %1777 = vmatpush1.msra.mxu0 %v677
  %1778 = vmatprep.subr.mxu0 %v674
  %1779 = vmatpush1.msra.mxu0 %v673
  %1780 = vmatprep.subr.mxu0 %v670
  %1781 = vmatpush1.msra.mxu0 %v669
  %1782 = vmatprep.subr.mxu0 %v666
  %1783 = vmatpush1.msra.mxu0 %v665
  %1784 = vmatprep.subr.mxu0 %v662
  %1785 = vmatpush1.msra.mxu0 %v661
  %1786 = vmatprep.subr.mxu0 %v658
  %1787 = vmatpush1.msra.mxu0 %v657
  %1788 = vmatprep.subr.mxu0 %v654
  %1789 = vmatpush1.msra.mxu0 %v653
  %1790 = vmatprep.subr.mxu0 %v650
  %1791 = vmatpush1.msra.mxu0 %v649
  %1792 = vmatprep.subr.mxu0 %v646
  %1793 = vmatpush1.msra.mxu0 %v645
  %1794 = vmatprep.subr.mxu0 %v642
  %1795 = vmatpush1.msra.mxu0 %v641
  %1796 = vmatprep.subr.mxu0 %v638
  %1797 = vmatpush1.msra.mxu0 %v637
  %1798 = vmatprep.subr.mxu0 %v634
  %1799 = vmatpush1.msra.mxu0 %v633
  %1800 = vmatprep.subr.mxu0 %v630
  %1801 = vmatpush1.msra.mxu0 %v629
  %1802 = vmatprep.subr.mxu0 %v626
  %1803 = vmatpush1.msra.mxu0 %v625
  %1804 = vmatprep.subr.mxu0 %v622
  %1805 = vmatpush1.msra.mxu0 %v621
  %1806 = vmatprep.subr.mxu0 0.0
  %1807 = vmatpush2.msra.mxu0 0.0
  %1808 = vmatprep.subr.mxu0 0.0
  %1809 = vmatpush2.msra.mxu0 0.0
  %1810 = vmatprep.subr.mxu0 0.0
  %1811 = vmatpush2.msra.mxu0 0.0
  %1812 = vmatprep.subr.mxu0 0.0
  %1813 = vmatpush2.msra.mxu0 0.0
  %1814 = vmatprep.subr.mxu0 0.0
  %1815 = vmatpush2.msra.mxu0 0.0
  %1816 = vmatprep.subr.mxu0 0.0
  %1817 = vmatpush2.msra.mxu0 0.0
  %1818 = vmatprep.subr.mxu0 0.0
  %1819 = vmatpush2.msra.mxu0 0.0
  %1820 = vmatprep.subr.mxu0 0.0
  %1821 = vmatpush2.msra.mxu0 0.0
  %1822 = vmatprep.subr.mxu0 0.0
  %1823 = vmatpush2.msra.mxu0 0.0
  %1824 = vmatprep.subr.mxu0 0.0
  %1825 = vmatpush2.msra.mxu0 0.0
  %1826 = vmatprep.subr.mxu0 0.0
  %1827 = vmatpush2.msra.mxu0 0.0
  %1828 = vmatprep.subr.mxu0 0.0
  %1829 = vmatpush2.msra.mxu0 0.0
  %1830 = vmatprep.subr.mxu0 0.0
  %1831 = vmatpush2.msra.mxu0 0.0
  %1832 = vmatprep.subr.mxu0 0.0
  %1833 = vmatpush2.msra.mxu0 0.0
  %1834 = vmatprep.subr.mxu0 0.0
  %1835 = vmatpush2.msra.mxu0 0.0
  %1836 = vmatprep.subr.mxu0 0.0
  %1837 = vmatpush2.msra.mxu0 0.0
  %1838 = vmatprep.mubr.f32.mxu0 0.0
  %1839 = vmatmul.mubr.f32.gmra.mxu0 %v1702
  %v1840 = vpop.f32.mrf.mxu0
  %v1841 = vadd.f32 0.0, %v1840
  %v1842 = vpop.f32.mrf.mxu0
  %v1843 = vadd.f32 0.0, %v1842
  %1844 = vdwg.mxu0
  %v1845 = vadd.f32 %v299, %v1770
  %v1846 = vadd.f32 %v301, %v1772
  %v1847 = vadd.f32 %v412, %v1841
  %v1848 = vadd.f32 %v414, %v1843
  %v1849 = vxor.u32 %v1845, 2147483648
  %v1850 = vxor.u32 %v1846, 2147483648
  %v1851 = vxor.u32 %v1847, 2147483648
  %v1852 = vmul.f32 %v1849, 1.442695
  %v1853 = vpow.pop %v1852
  %v1854 = vmul.f32 %v1850, 1.442695
  %v1855 = vpow.pop %v1854
  %v1856 = vmul.f32 %v1851, 1.442695
  %v1857 = vpow.pop %v1856
  %v1858 = vadd.f32 %v1853, 1.0
  %v1859 = vadd.f32 %v1855, 1.0
  %v1860 = vadd.f32 %v1857, 1.0
  %v1861 = vrcp.pop %v1858
  %v1862 = vmul.f32 1.0, %v1861
  %v1863 = vrcp.pop %v1859
  %v1864 = vmul.f32 1.0, %v1863
  %v1865 = vrcp.pop %v1860
  %v1866 = vmul.f32 1.0, %v1865
  %v1867 = vtanh.pop %v1848
  %v1868 = vmul.f32 %v1864, %v1700
  %v1869 = vmul.f32 %v1862, %v1867
  %v1870 = vadd.f32 %v1868, %v1869
  %v1871 = vtanh.pop %v1870
  %v1872 = vmul.f32 %v1866, %v1871
  %1873 = vmatprep.subr.mxu0 %v680
  %1874 = vmatpush1.msra.mxu0 %v679
  %1875 = vmatprep.subr.mxu0 %v676
  %1876 = vmatpush1.msra.mxu0 %v675
  %1877 = vmatprep.subr.mxu0 %v672
  %1878 = vmatpush1.msra.mxu0 %v671
  %1879 = vmatprep.subr.mxu0 %v668
  %1880 = vmatpush1.msra.mxu0 %v667
  %1881 = vmatprep.subr.mxu0 %v664
  %1882 = vmatpush1.msra.mxu0 %v663
  %1883 = vmatprep.subr.mxu0 %v660
  %1884 = vmatpush1.msra.mxu0 %v659
  %1885 = vmatprep.subr.mxu0 %v656
  %1886 = vmatpush1.msra.mxu0 %v655
  %1887 = vmatprep.subr.mxu0 %v652
  %1888 = vmatpush1.msra.mxu0 %v651
  %1889 = vmatprep.subr.mxu0 %v648
  %1890 = vmatpush1.msra.mxu0 %v647
  %1891 = vmatprep.subr.mxu0 %v644
  %1892 = vmatpush1.msra.mxu0 %v643
  %1893 = vmatprep.subr.mxu0 %v640
  %1894 = vmatpush1.msra.mxu0 %v639
  %1895 = vmatprep.subr.mxu0 %v636
  %1896 = vmatpush1.msra.mxu0 %v635
  %1897 = vmatprep.subr.mxu0 %v632
  %1898 = vmatpush1.msra.mxu0 %v631
  %1899 = vmatprep.subr.mxu0 %v628
  %1900 = vmatpush1.msra.mxu0 %v627
  %1901 = vmatprep.subr.mxu0 %v624
  %1902 = vmatpush1.msra.mxu0 %v623
  %1903 = vmatprep.subr.mxu0 %v620
  %1904 = vmatpush1.msra.mxu0 %v619
  %1905 = vmatprep.subr.mxu0 0.0
  %1906 = vmatpush2.msra.mxu0 0.0
  %1907 = vmatprep.subr.mxu0 0.0
  %1908 = vmatpush2.msra.mxu0 0.0
  %1909 = vmatprep.subr.mxu0 0.0
  %1910 = vmatpush2.msra.mxu0 0.0
  %1911 = vmatprep.subr.mxu0 0.0
  %1912 = vmatpush2.msra.mxu0 0.0
  %1913 = vmatprep.subr.mxu0 0.0
  %1914 = vmatpush2.msra.mxu0 0.0
  %1915 = vmatprep.subr.mxu0 0.0
  %1916 = vmatpush2.msra.mxu0 0.0
  %1917 = vmatprep.subr.mxu0 0.0
  %1918 = vmatpush2.msra.mxu0 0.0
  %1919 = vmatprep.subr.mxu0 0.0
  %1920 = vmatpush2.msra.mxu0 0.0
  %1921 = vmatprep.subr.mxu0 0.0
  %1922 = vmatpush2.msra.mxu0 0.0
  %1923 = vmatprep.subr.mxu0 0.0
  %1924 = vmatpush2.msra.mxu0 0.0
  %1925 = vmatprep.subr.mxu0 0.0
  %1926 = vmatpush2.msra.mxu0 0.0
  %1927 = vmatprep.subr.mxu0 0.0
  %1928 = vmatpush2.msra.mxu0 0.0
  %1929 = vmatprep.subr.mxu0 0.0
  %1930 = vmatpush2.msra.mxu0 0.0
  %1931 = vmatprep.subr.mxu0 0.0
  %1932 = vmatpush2.msra.mxu0 0.0
  %1933 = vmatprep.subr.mxu0 0.0
  %1934 = vmatpush2.msra.mxu0 0.0
  %1935 = vmatprep.subr.mxu0 0.0
  %1936 = vmatpush2.msra.mxu0 0.0
  %1937 = vmatprep.mubr.f32.mxu0 0.0
  %1938 = vmatmul.mubr.f32.gmra.mxu0 %v1872
  %v1939 = vpop.f32.mrf.mxu0
  %v1940 = vadd.f32 0.0, %v1939
  %v1941 = vpop.f32.mrf.mxu0
  %v1942 = vadd.f32 0.0, %v1941
  %1943 = vdwg.mxu0
  %1944 = vmatprep.subr.mxu0 %v682
  %1945 = vmatpush1.msra.mxu0 %v681
  %1946 = vmatprep.subr.mxu0 %v678
  %1947 = vmatpush1.msra.mxu0 %v677
  %1948 = vmatprep.subr.mxu0 %v674
  %1949 = vmatpush1.msra.mxu0 %v673
  %1950 = vmatprep.subr.mxu0 %v670
  %1951 = vmatpush1.msra.mxu0 %v669
  %1952 = vmatprep.subr.mxu0 %v666
  %1953 = vmatpush1.msra.mxu0 %v665
  %1954 = vmatprep.subr.mxu0 %v662
  %1955 = vmatpush1.msra.mxu0 %v661
  %1956 = vmatprep.subr.mxu0 %v658
  %1957 = vmatpush1.msra.mxu0 %v657
  %1958 = vmatprep.subr.mxu0 %v654
  %1959 = vmatpush1.msra.mxu0 %v653
  %1960 = vmatprep.subr.mxu0 %v650
  %1961 = vmatpush1.msra.mxu0 %v649
  %1962 = vmatprep.subr.mxu0 %v646
  %1963 = vmatpush1.msra.mxu0 %v645
  %1964 = vmatprep.subr.mxu0 %v642
  %1965 = vmatpush1.msra.mxu0 %v641
  %1966 = vmatprep.subr.mxu0 %v638
  %1967 = vmatpush1.msra.mxu0 %v637
  %1968 = vmatprep.subr.mxu0 %v634
  %1969 = vmatpush1.msra.mxu0 %v633
  %1970 = vmatprep.subr.mxu0 %v630
  %1971 = vmatpush1.msra.mxu0 %v629
  %1972 = vmatprep.subr.mxu0 %v626
  %1973 = vmatpush1.msra.mxu0 %v625
  %1974 = vmatprep.subr.mxu0 %v622
  %1975 = vmatpush1.msra.mxu0 %v621
  %1976 = vmatprep.subr.mxu0 0.0
  %1977 = vmatpush2.msra.mxu0 0.0
  %1978 = vmatprep.subr.mxu0 0.0
  %1979 = vmatpush2.msra.mxu0 0.0
  %1980 = vmatprep.subr.mxu0 0.0
  %1981 = vmatpush2.msra.mxu0 0.0
  %1982 = vmatprep.subr.mxu0 0.0
  %1983 = vmatpush2.msra.mxu0 0.0
  %1984 = vmatprep.subr.mxu0 0.0
  %1985 = vmatpush2.msra.mxu0 0.0
  %1986 = vmatprep.subr.mxu0 0.0
  %1987 = vmatpush2.msra.mxu0 0.0
  %1988 = vmatprep.subr.mxu0 0.0
  %1989 = vmatpush2.msra.mxu0 0.0
  %1990 = vmatprep.subr.mxu0 0.0
  %1991 = vmatpush2.msra.mxu0 0.0
  %1992 = vmatprep.subr.mxu0 0.0
  %1993 = vmatpush2.msra.mxu0 0.0
  %1994 = vmatprep.subr.mxu0 0.0
  %1995 = vmatpush2.msra.mxu0 0.0
  %1996 = vmatprep.subr.mxu0 0.0
  %1997 = vmatpush2.msra.mxu0 0.0
  %1998 = vmatprep.subr.mxu0 0.0
  %1999 = vmatpush2.msra.mxu0 0.0
  %2000 = vmatprep.subr.mxu0 0.0
  %2001 = vmatpush2.msra.mxu0 0.0
  %2002 = vmatprep.subr.mxu0 0.0
  %2003 = vmatpush2.msra.mxu0 0.0
  %2004 = vmatprep.subr.mxu0 0.0
  %2005 = vmatpush2.msra.mxu0 0.0
  %2006 = vmatprep.subr.mxu0 0.0
  %2007 = vmatpush2.msra.mxu0 0.0
  %2008 = vmatprep.mubr.f32.mxu0 0.0
  %2009 = vmatmul.mubr.f32.gmra.mxu0 %v1872
  %v2010 = vpop.f32.mrf.mxu0
  %v2011 = vadd.f32 0.0, %v2010
  %v2012 = vpop.f32.mrf.mxu0
  %v2013 = vadd.f32 0.0, %v2012
  %2014 = vdwg.mxu0
  %v2015 = vadd.f32 %v305, %v1940
  %v2016 = vadd.f32 %v307, %v1942
  %v2017 = vadd.f32 %v418, %v2011
  %v2018 = vadd.f32 %v420, %v2013
  %v2019 = vxor.u32 %v2015, 2147483648
  %v2020 = vxor.u32 %v2016, 2147483648
  %v2021 = vxor.u32 %v2017, 2147483648
  %v2022 = vmul.f32 %v2019, 1.442695
  %v2023 = vpow.pop %v2022
  %v2024 = vmul.f32 %v2020, 1.442695
  %v2025 = vpow.pop %v2024
  %v2026 = vmul.f32 %v2021, 1.442695
  %v2027 = vpow.pop %v2026
  %v2028 = vadd.f32 %v2023, 1.0
  %v2029 = vadd.f32 %v2025, 1.0
  %v2030 = vadd.f32 %v2027, 1.0
  %v2031 = vrcp.pop %v2028
  %v2032 = vmul.f32 1.0, %v2031
  %v2033 = vrcp.pop %v2029
  %v2034 = vmul.f32 1.0, %v2033
  %v2035 = vrcp.pop %v2030
  %v2036 = vmul.f32 1.0, %v2035
  %v2037 = vtanh.pop %v2018
  %v2038 = vmul.f32 %v2034, %v1870
  %v2039 = vmul.f32 %v2032, %v2037
  %v2040 = vadd.f32 %v2038, %v2039
  %v2041 = vtanh.pop %v2040
  %v2042 = vmul.f32 %v2036, %v2041
  %v2043 = vxor.u32 %v517, 2147483648
  %v2044 = vxor.u32 %v615, 2147483648
  %v2045 = vmul.f32 %v2043, 1.442695
  %v2046 = vpow.pop %v2045
  %v2047 = vmul.f32 %v2044, 1.442695
  %v2048 = vpow.pop %v2047
  %v2049 = vadd.f32 %v2046, 1.0
  %v2050 = vadd.f32 %v2048, 1.0
  %v2051 = vrcp.pop %v2049
  %v2052 = vmul.f32 1.0, %v2051
  %v2053 = vrcp.pop %v2050
  %v2054 = vmul.f32 1.0, %v2053
  %v2055 = vtanh.pop %v617
  %v2056 = vmul.f32 %v2052, %v2055
  %v2057 = vtanh.pop %v2056
  %v2058 = vmul.f32 %v2054, %v2057
  %v2059 = vld [vmem:[%s4] sm:$0xff]
  %v2060 = vld [vmem:[%s4 + $0x8] sm:$0xff]
  %v2061 = vld [vmem:[%s4 + $0x10] sm:$0xff]
  %v2062 = vld [vmem:[%s4 + $0x18] sm:$0xff]
  %v2063 = vld [vmem:[%s4 + $0x20] sm:$0xff]
  %v2064 = vld [vmem:[%s4 + $0x28] sm:$0xff]
  %v2065 = vld [vmem:[%s4 + $0x30] sm:$0xff]
  %v2066 = vld [vmem:[%s4 + $0x38] sm:$0xff]
  %v2067 = vld [vmem:[%s4 + $0x40] sm:$0xff]
  %v2068 = vld [vmem:[%s4 + $0x48] sm:$0xff]
  %v2069 = vld [vmem:[%s4 + $0x50] sm:$0xff]
  %v2070 = vld [vmem:[%s4 + $0x58] sm:$0xff]
  %v2071 = vld [vmem:[%s4 + $0x60] sm:$0xff]
  %v2072 = vld [vmem:[%s4 + $0x68] sm:$0xff]
  %v2073 = vld [vmem:[%s4 + $0x70] sm:$0xff]
  %v2074 = vld [vmem:[%s4 + $0x78] sm:$0xff]
  %v2075 = vld [vmem:[%s4 + $0x80] sm:$0xff]
  %v2076 = vld [vmem:[%s4 + $0x88] sm:$0xff]
  %v2077 = vld [vmem:[%s4 + $0x90] sm:$0xff]
  %v2078 = vld [vmem:[%s4 + $0x98] sm:$0xff]
  %v2079 = vld [vmem:[%s4 + $0xa0] sm:$0xff]
  %v2080 = vld [vmem:[%s4 + $0xa8] sm:$0xff]
  %v2081 = vld [vmem:[%s4 + $0xb0] sm:$0xff]
  %v2082 = vld [vmem:[%s4 + $0xb8] sm:$0xff]
  %v2083 = vld [vmem:[%s4 + $0xc0] sm:$0xff]
  %v2084 = vld [vmem:[%s4 + $0xc8] sm:$0xff]
  %v2085 = vld [vmem:[%s4 + $0xd0] sm:$0xff]
  %v2086 = vld [vmem:[%s4 + $0xd8] sm:$0xff]
  %v2087 = vld [vmem:[%s4 + $0xe0] sm:$0xff]
  %v2088 = vld [vmem:[%s4 + $0xe8] sm:$0xff]
  %v2089 = vld [vmem:[%s4 + $0xf0] sm:$0xff]
  %v2090 = vld [vmem:[%s4 + $0xf8] sm:$0xff]
  %v2091 = vld [vmem:[%s5] sm:$0x1]
  %v2093 = vlaneseq
  %v2094 = vshrl.u32 %v2093, 7
  %v2095 = vsub.s32 0, %v2094
  %v2096 = vrot.slane %v2091, %v2095
  %2098 = vmatprep.subr.mxu0 0.0
  %2099 = vmatpush1.msra.mxu0 %v2074
  %2100 = vmatprep.subr.mxu0 0.0
  %2101 = vmatpush1.msra.mxu0 %v2073
  %2102 = vmatprep.subr.mxu0 0.0
  %2103 = vmatpush1.msra.mxu0 %v2072
  %2104 = vmatprep.subr.mxu0 0.0
  %2105 = vmatpush1.msra.mxu0 %v2071
  %2106 = vmatprep.subr.mxu0 0.0
  %2107 = vmatpush1.msra.mxu0 %v2070
  %2108 = vmatprep.subr.mxu0 0.0
  %2109 = vmatpush1.msra.mxu0 %v2069
  %2110 = vmatprep.subr.mxu0 0.0
  %2111 = vmatpush1.msra.mxu0 %v2068
  %2112 = vmatprep.subr.mxu0 0.0
  %2113 = vmatpush1.msra.mxu0 %v2067
  %2114 = vmatprep.subr.mxu0 0.0
  %2115 = vmatpush1.msra.mxu0 %v2066
  %2116 = vmatprep.subr.mxu0 0.0
  %2117 = vmatpush1.msra.mxu0 %v2065
  %2118 = vmatprep.subr.mxu0 0.0
  %2119 = vmatpush1.msra.mxu0 %v2064
  %2120 = vmatprep.subr.mxu0 0.0
  %2121 = vmatpush1.msra.mxu0 %v2063
  %2122 = vmatprep.subr.mxu0 0.0
  %2123 = vmatpush1.msra.mxu0 %v2062
  %2124 = vmatprep.subr.mxu0 0.0
  %2125 = vmatpush1.msra.mxu0 %v2061
  %2126 = vmatprep.subr.mxu0 0.0
  %2127 = vmatpush1.msra.mxu0 %v2060
  %2128 = vmatprep.subr.mxu0 0.0
  %2129 = vmatpush1.msra.mxu0 %v2059
  %2130 = vmatprep.subr.mxu0 0.0
  %2131 = vmatpush2.msra.mxu0 %v2090
  %2132 = vmatprep.subr.mxu0 0.0
  %2133 = vmatpush2.msra.mxu0 %v2089
  %2134 = vmatprep.subr.mxu0 0.0
  %2135 = vmatpush2.msra.mxu0 %v2088
  %2136 = vmatprep.subr.mxu0 0.0
  %2137 = vmatpush2.msra.mxu0 %v2087
  %2138 = vmatprep.subr.mxu0 0.0
  %2139 = vmatpush2.msra.mxu0 %v2086
  %2140 = vmatprep.subr.mxu0 0.0
  %2141 = vmatpush2.msra.mxu0 %v2085
  %2142 = vmatprep.subr.mxu0 0.0
  %2143 = vmatpush2.msra.mxu0 %v2084
  %2144 = vmatprep.subr.mxu0 0.0
  %2145 = vmatpush2.msra.mxu0 %v2083
  %2146 = vmatprep.subr.mxu0 0.0
  %2147 = vmatpush2.msra.mxu0 %v2082
  %2148 = vmatprep.subr.mxu0 0.0
  %2149 = vmatpush2.msra.mxu0 %v2081
  %2150 = vmatprep.subr.mxu0 0.0
  %2151 = vmatpush2.msra.mxu0 %v2080
  %2152 = vmatprep.subr.mxu0 0.0
  %2153 = vmatpush2.msra.mxu0 %v2079
  %2154 = vmatprep.subr.mxu0 0.0
  %2155 = vmatpush2.msra.mxu0 %v2078
  %2156 = vmatprep.subr.mxu0 0.0
  %2157 = vmatpush2.msra.mxu0 %v2077
  %2158 = vmatprep.subr.mxu0 0.0
  %2159 = vmatpush2.msra.mxu0 %v2076
  %2160 = vmatprep.subr.mxu0 0.0
  %2161 = vmatpush2.msra.mxu0 %v2075
  %2162 = vmatprep.mubr.f32.mxu0 %v2058
  %2163 = vmatmul.mubr.f32.gmra.mxu0 %v2042
  %v2164 = vpop.f32.mrf.mxu0
  %v2165 = vadd.f32 %v2096, %v2164
  %v2166 = vpop.f32.mrf.mxu0
  %2167 = vdwg.mxu0
  %vm2168 = vcmask 15360
  %v2169 = vsel %vm2168, %v2165, -inf
  %2170 = vmax.xlane.f32.xlu0 %v2169
  %v2171 = vpop.xlane.xlu0 %2170
  %v2172 = vsub.f32 %v2165, %v2171
  %v2173 = vmul.f32 %v2172, 1.442695
  %v2174 = vpow.pop %v2173
  %v2175 = vsel %vm2168, %v2174, 0.0
  %2176 = vadd.xlane.f32.xlu0 %v2175
  %v2177 = vpop.xlane.xlu0 %2176
  %v2178 = vlog2.pop %v2177
  %v2179 = vmul.f32 %v2178, 0.6931472
  %v2180 = vsub.f32 %v2172, %v2179
  %2181 = vst.msk [vmem:[%s6] sm:$0xff] %vm2168, %v2180
  // Predicated region
  $region26: #{bi_lstm_forward.1} parent=0 // pred_check
    _
  $region27: #{bi_lstm_forward.1} parent=0 // pred_check_branch
    %2183 = sbr.rel (0) target = $region29
  $region28: #{bi_lstm_forward.1} parent=0 // pred_region
    _
  $region29: #{bi_lstm_forward.1} parent=0 // pred_fallthru
    _
  // Predicated region
  $region30: #{bi_lstm_forward.1} parent=0 // pred_check
    _
  $region31: #{bi_lstm_forward.1} parent=0 // pred_check_branch
    %2185 = sbr.rel (0) target = $region33
  $region32: #{bi_lstm_forward.1} parent=0 // pred_region
    _
  $region33: #{bi_lstm_forward.1} parent=0 // pred_fallthru
    _

</llo_original>
